<compile_context>
chip_gen: v5e
topology: v5e:2x2
jax: 0.10.0
libtpu: 0.0.40
codegen_flags: <defaults>
</compile_context>

<pallas_src>
import functools

import jax
import jax.numpy as jnp
from jax.experimental import pallas as pl
from jax.experimental.pallas import tpu as pltpu

BN_EPS = 1e-5
EXPANSION = 4


# ------------------------------ fused kernel -------------------------------

def _make_bottleneck_kernel(*, stride, has_proj, tile_h):
    """Fused Bottleneck kernel for a static stride / shortcut / row-tile
    configuration. Grid = (batch, output-row-tile)."""

    s = stride
    TH = tile_h

    def kernel(*refs):
        if has_proj:
            (x_ref, w1_ref, b1_ref, w2_ref, b2_ref,
             w3_ref, b3_ref, ws_ref, bs_ref, o_ref, h1p_ref) = refs
        else:
            (x_ref, w1_ref, b1_ref, w2_ref, b2_ref,
             w3_ref, b3_ref, o_ref, h1p_ref) = refs
            ws_ref = bs_ref = None

        _, H, W, Cin = x_ref.shape
        P = w1_ref.shape[1]                      # planes
        _, _, Wo, C4 = o_ref.shape               # expansion * planes
        _, Wpad, _ = h1p_ref.shape

        r = pl.program_id(1)
        row0 = pl.multiple_of(r * TH, TH)        # first output row of this tile

        def mm(a, w):                            # bf16 x bf16 -> f32 on the MXU
            return jnp.dot(a, w, preferred_element_type=jnp.float32)

        # ---- conv1 (1x1) + folded bn1 + ReLU: once per image (row-tile 0) ---
        # Written to the zero-padded bf16 scratch with full-width, aligned row
        # stores (W padding baked in); only the two border rows are zeroed.
        @pl.when(r == 0)
        def _():
            x2d = x_ref[...].reshape(H * W, Cin)                     # bf16
            h1 = jnp.maximum(mm(x2d, w1_ref[...]) + b1_ref[...], 0.0)
            h1 = h1.astype(jnp.bfloat16).reshape(H, W, P)
            zl = jnp.zeros((H, 1, P), jnp.bfloat16)
            zr = jnp.zeros((H, Wpad - W - 1, P), jnp.bfloat16)
            h1p_ref[1:H + 1, :, :] = jnp.concatenate([zl, h1, zr], axis=1)
            zrow = jnp.zeros((1, Wpad, P), jnp.bfloat16)
            h1p_ref[0:1, :, :] = zrow
            h1p_ref[H + 1:H + 2, :, :] = zrow

        # ---- conv2 (3x3, stride s, pad 1) + folded bn2 + ReLU ---------------
        # Per kh: one aligned slab load; the three kw taps are stacked along
        # the contraction dim (K = 3P) -> 3 MXU dots per tile instead of 9.
        acc = jnp.zeros((TH * Wo, P), jnp.float32)
        for kh in range(3):
            rstart = s * row0 + kh
            if s == 1:
                slab = h1p_ref[pl.ds(rstart, TH), :, :]              # (TH, Wpad, P)
                taps = [slab[:, kw:kw + Wo, :] for kw in range(3)]
            else:
                slab = h1p_ref[pl.ds(rstart, TH, stride=s), :, :]
                taps = [slab[:, kw:kw + s * Wo, :]
                        .reshape(TH, Wo, s, P)[:, :, 0, :] for kw in range(3)]
            stacked = jnp.concatenate(taps, axis=-1).reshape(TH * Wo, 3 * P)
            acc = acc + mm(stacked, w2_ref[kh])                      # (3P, P)
        h2 = jnp.maximum(acc + b2_ref[...], 0.0).astype(jnp.bfloat16)

        # ---- conv3 (1x1) + folded bn3 (no ReLU before the residual add) -----
        y = mm(h2, w3_ref[...]) + b3_ref[...]                        # (TH*Wo, C4) f32

        # ---- shortcut (residual add kept in f32) ----------------------------
        if has_proj:
            if s == 1:
                xs = x_ref[:, pl.ds(row0, TH), :, :].reshape(TH * Wo, Cin)
            else:
                xr = x_ref[:, pl.ds(s * row0, TH, stride=s), :, :]
                xr = xr.reshape(TH, W, Cin)[:, :s * Wo, :]
                xr = xr.reshape(TH, Wo, s, Cin)[:, :, 0, :]
                xs = xr.reshape(TH * Wo, Cin)
            sc = mm(xs, ws_ref[...]) + bs_ref[...]                   # (TH*Wo, C4)
        else:
            # identity shortcut (Cin == C4, stride == 1)
            sc = x_ref[:, pl.ds(row0, TH), :, :].reshape(TH * Wo, C4)
            sc = sc.astype(jnp.float32)

        out = jnp.maximum(y + sc, 0.0)
        o_ref[0] = out.reshape(TH, Wo, C4).astype(o_ref.dtype)

    return kernel


# --------------------------------- wrapper ---------------------------------

def _fold_bn(w, bn):
    """Fold eval-mode BatchNorm into the (bias-free) conv: W' = W*scale, b' = shift."""
    scale = bn["gamma"] * jax.lax.rsqrt(bn["var"] + BN_EPS)
    w_f = w * scale[:, None, None, None]
    b_f = bn["beta"] - bn["mean"] * scale
    return w_f, b_f


def bottleneck_forward(params, x_nchw, *, stride=1):
    """PyTorch-semantics Bottleneck forward. x: (B, Cin, H, W) f32, NCHW."""
    B, Cin, H, W = x_nchw.shape
    P = params["conv1_w"].shape[0]
    C4 = params["conv3_w"].shape[0]
    s = stride
    Ho = (H + 2 - 3) // s + 1
    Wo = (W + 2 - 3) // s + 1
    has_proj = (s != 1) or (Cin != C4)
    if not has_proj:
        assert Cin == C4
    if s != 1:
        # TODO(synk): stride>1 path assumes stride-divisible spatial dims.
        assert H % s == 0 and W % s == 0

    # Output-row tile: largest divisor of Ho that is <= 8 (gives B*R grid steps).
    TH = max(d for d in range(1, min(Ho, 8) + 1) if Ho % d == 0)
    R = Ho // TH

    # Fold BN and lay out weights as (K_in, N_out) bf16 matmul operands.
    w1f, b1 = _fold_bn(params["conv1_w"], params["bn1"])   # (P, Cin, 1, 1)
    w2f, b2 = _fold_bn(params["conv2_w"], params["bn2"])   # (P, P, 3, 3)
    w3f, b3 = _fold_bn(params["conv3_w"], params["bn3"])   # (C4, P, 1, 1)

    w1m = w1f.reshape(P, Cin).T.astype(jnp.bfloat16)                         # (Cin, P)
    # Stack the 3 kw taps along the contraction dim: [kh, kw*P + cin, cout].
    w2s = w2f.transpose(2, 3, 1, 0).reshape(3, 3 * P, P).astype(jnp.bfloat16)
    w3m = w3f.reshape(C4, P).T.astype(jnp.bfloat16)                          # (P, C4)
    b1 = b1.reshape(1, P).astype(jnp.float32)
    b2 = b2.reshape(1, P).astype(jnp.float32)
    b3 = b3.reshape(1, C4).astype(jnp.float32)

    # bf16 activations into the kernel (halves the input DMA).
    x_nhwc = jnp.transpose(x_nchw, (0, 2, 3, 1)).astype(jnp.bfloat16)

    Hpad = H + 2
    Wpad = max(W + 2, 2 + s * Wo)

    args = [x_nhwc, w1m, b1, w2s, b2, w3m, b3]
    in_specs = [
        pl.BlockSpec((1, H, W, Cin), lambda b, r: (b, 0, 0, 0)),
        pl.BlockSpec((Cin, P), lambda b, r: (0, 0)),
        pl.BlockSpec((1, P), lambda b, r: (0, 0)),
        pl.BlockSpec((3, 3 * P, P), lambda b, r: (0, 0, 0)),
        pl.BlockSpec((1, P), lambda b, r: (0, 0)),
        pl.BlockSpec((P, C4), lambda b, r: (0, 0)),
        pl.BlockSpec((1, C4), lambda b, r: (0, 0)),
    ]
    if has_proj:
        wsf, bs = _fold_bn(params["short_w"], params["bn_s"])                # (C4, Cin, 1, 1)
        wsm = wsf.reshape(C4, Cin).T.astype(jnp.bfloat16)                    # (Cin, C4)
        bs = bs.reshape(1, C4).astype(jnp.float32)
        args += [wsm, bs]
        in_specs += [pl.BlockSpec((Cin, C4), lambda b, r: (0, 0)),
                     pl.BlockSpec((1, C4), lambda b, r: (0, 0))]

    kernel = _make_bottleneck_kernel(stride=s, has_proj=has_proj, tile_h=TH)

    out_nhwc = pl.pallas_call(
        kernel,
        out_shape=jax.ShapeDtypeStruct((B, Ho, Wo, C4), jnp.float32),
        grid=(B, R),
        in_specs=in_specs,
        out_specs=pl.BlockSpec((1, TH, Wo, C4), lambda b, r: (b, r, 0, 0)),
        scratch_shapes=[pltpu.VMEM((Hpad, Wpad, P), jnp.bfloat16)],
        compiler_params=pltpu.CompilerParams(
            # batch axis parallel (megacore); row-tile axis carries the h1p
            # scratch filled at r == 0, so it must stay sequential.
            dimension_semantics=("parallel", "arbitrary"),
            vmem_limit_bytes=64 * 1024 * 1024),
    )(*args)

    return jnp.transpose(out_nhwc, (0, 3, 1, 2))   # back to NCHW


# ------------------------- parameters & reference --------------------------

def _bn_params(key, c):
    k1, k2, k3, k4 = jax.random.split(key, 4)
    return {
        "gamma": jax.random.uniform(k1, (c,), jnp.float32, 0.5, 1.5),
        "beta": 0.1 * jax.random.normal(k2, (c,), jnp.float32),
        "mean": 0.1 * jax.random.normal(k3, (c,), jnp.float32),
        "var": jax.random.uniform(k4, (c,), jnp.float32, 0.5, 1.5),
    }


def init_bottleneck_params(key, in_planes, planes, stride=1):
    c4 = EXPANSION * planes
    ks = list(jax.random.split(key, 8))

    def conv_w(k, o, i, kh, kw):
        fan_in = i * kh * kw
        return jax.random.normal(k, (o, i, kh, kw), jnp.float32) * jnp.sqrt(2.0 / fan_in)

    p = {
        "conv1_w": conv_w(ks[0], planes, in_planes, 1, 1), "bn1": _bn_params(ks[1], planes),
        "conv2_w": conv_w(ks[2], planes, planes, 3, 3),    "bn2": _bn_params(ks[3], planes),
        "conv3_w": conv_w(ks[4], c4, planes, 1, 1),        "bn3": _bn_params(ks[5], c4),
    }
    if stride != 1 or in_planes != c4:
        p["short_w"] = conv_w(ks[6], c4, in_planes, 1, 1)
        p["bn_s"] = _bn_params(ks[7], c4)
    return p


def bottleneck_reference(params, x, *, stride=1):
    """Pure-JAX reference (eval-mode BN), NCHW in/out."""
    def bn(y, p):
        scale = p["gamma"] * jax.lax.rsqrt(p["var"] + BN_EPS)
        shift = p["beta"] - p["mean"] * scale
        return y * scale[None, :, None, None] + shift[None, :, None, None]

    def conv(y, w, s, pad):
        return jax.lax.conv_general_dilated(
            y, w, window_strides=(s, s), padding=[(pad, pad), (pad, pad)],
            dimension_numbers=("NCHW", "OIHW", "NCHW"))

    out = jax.nn.relu(bn(conv(x, params["conv1_w"], 1, 0), params["bn1"]))
    out = jax.nn.relu(bn(conv(out, params["conv2_w"], stride, 1), params["bn2"]))
    out = bn(conv(out, params["conv3_w"], 1, 0), params["bn3"])
    if "short_w" in params:
        sc = bn(conv(x, params["short_w"], stride, 0), params["bn_s"])
    else:
        sc = x
    return jax.nn.relu(out + sc)


# ----------------------------------- main -----------------------------------

if __name__ == "__main__":
    key = jax.random.PRNGKey(0)
    B, H, W = 2, 16, 16

    # (in_planes, planes, stride): first exercises the projection shortcut
    # (Cin != 4*planes), second the identity shortcut (Cin == 4*planes).
    configs = [(16, 8, 1), (32, 8, 1)]

    for idx, (in_planes, planes, stride) in enumerate(configs):
        k_param, k_x, key = jax.random.split(key, 3)
        c4 = EXPANSION * planes
        ho = (H + 2 - 3) // stride + 1
        wo = (W + 2 - 3) // stride + 1

        params = init_bottleneck_params(k_param, in_planes, planes, stride)
        x = jax.random.normal(k_x, (B, in_planes, H, W), jnp.float32)

        fwd = jax.jit(functools.partial(bottleneck_forward, stride=stride))
        out = fwd(params, x)
        jax.block_until_ready(out)

        assert out.shape == (B, c4, ho, wo)
        assert bool(jnp.all(jnp.isfinite(out)))
        assert bool(jnp.all(out >= 0.0))          # final ReLU

        # Correctness vs a pure-JAX reference (bf16 MXU operands -> loose tol).
        ref = bottleneck_reference(params, x, stride=stride)
        rel_err = float(jnp.max(jnp.abs(out - ref)) / (jnp.max(jnp.abs(ref)) + 1e-6))
        assert rel_err < 5e-2, f"config {idx}: relative error too large: {rel_err}"

    print("KERNEL_OK")
</pallas_src>

<mosaic_0001>
module attributes {stable_mosaic.version = 11 : i64} {
  func.func @kernel(%arg0: i32, %arg1: i32, %arg2: memref<1x16x16x16xbf16, #tpu.memory_space<vmem>>, %arg3: memref<16x8xbf16, #tpu.memory_space<vmem>>, %arg4: memref<1x8xf32, #tpu.memory_space<vmem>>, %arg5: memref<3x24x8xbf16, #tpu.memory_space<vmem>>, %arg6: memref<1x8xf32, #tpu.memory_space<vmem>>, %arg7: memref<8x32xbf16, #tpu.memory_space<vmem>>, %arg8: memref<1x32xf32, #tpu.memory_space<vmem>>, %arg9: memref<16x32xbf16, #tpu.memory_space<vmem>>, %arg10: memref<1x32xf32, #tpu.memory_space<vmem>>, %arg11: memref<1x8x16x32xf32, #tpu.memory_space<vmem>>, %arg12: memref<18x18x8xbf16, #tpu.memory_space<vmem>>) attributes {dimension_semantics = [#tpu.dimension_semantics<parallel>, #tpu.dimension_semantics<arbitrary>], iteration_bounds = array<i64: 2, 2>, scalar_prefetch = 0 : i64, scratch_operands = 1 : i64, tpu.core_type = #tpu.core_type<tc>, window_params = [{transform_indices = @transform_0, window_bounds = array<i64: 1, 16, 16, 16>}, {pipeline_mode = #tpu.pipeline_mode<synchronous>, transform_indices = @transform_1, window_bounds = array<i64: 16, 8>}, {pipeline_mode = #tpu.pipeline_mode<synchronous>, transform_indices = @transform_2, window_bounds = array<i64: 1, 8>}, {pipeline_mode = #tpu.pipeline_mode<synchronous>, transform_indices = @transform_3, window_bounds = array<i64: 3, 24, 8>}, {pipeline_mode = #tpu.pipeline_mode<synchronous>, transform_indices = @transform_4, window_bounds = array<i64: 1, 8>}, {pipeline_mode = #tpu.pipeline_mode<synchronous>, transform_indices = @transform_5, window_bounds = array<i64: 8, 32>}, {pipeline_mode = #tpu.pipeline_mode<synchronous>, transform_indices = @transform_6, window_bounds = array<i64: 1, 32>}, {pipeline_mode = #tpu.pipeline_mode<synchronous>, transform_indices = @transform_7, window_bounds = array<i64: 16, 32>}, {pipeline_mode = #tpu.pipeline_mode<synchronous>, transform_indices = @transform_8, window_bounds = array<i64: 1, 32>}, {transform_indices = @transform_9, window_bounds = array<i64: 1, 8, 16, 32>}]} {
    %c8_i32 = arith.constant 8 : i32
    %0 = arith.muli %arg1, %c8_i32 : i32
    %1 = tpu.assume_multiple %0, 8 : i32
    %c0_i32 = arith.constant 0 : i32
    %2 = arith.cmpi eq, %arg1, %c0_i32 : i32
    %3 = arith.extui %2 : i1 to i32
    %c0_i32_0 = arith.constant 0 : i32
    %4 = arith.cmpi ne, %3, %c0_i32_0 : i32
    scf.if %4 {
      %c0_41 = arith.constant 0 : index
      %c0_42 = arith.constant 0 : index
      %c0_43 = arith.constant 0 : index
      %c0_44 = arith.constant 0 : index
      %71 = vector.load %arg2[%c0_41, %c0_42, %c0_43, %c0_44] : memref<1x16x16x16xbf16, #tpu.memory_space<vmem>>, vector<1x16x16x16xbf16>
      %72 = vector.shape_cast %71 : vector<1x16x16x16xbf16> to vector<256x16xbf16>
      %c0_45 = arith.constant 0 : index
      %c0_46 = arith.constant 0 : index
      %73 = vector.load %arg3[%c0_45, %c0_46] : memref<16x8xbf16, #tpu.memory_space<vmem>>, vector<16x8xbf16>
      %cst_47 = arith.constant dense<0.000000e+00> : vector<256x8xf32>
      %74 = tpu.matmul %72, %73, %cst_47 {dimension_numbers = #tpu.dot_dimension_numbers<[1], [0], [0], [1], [0, 0, 1, 1], [], []>} : vector<256x16xbf16>, vector<16x8xbf16>, vector<256x8xf32> -> vector<256x8xf32>
      %c0_48 = arith.constant 0 : index
      %c0_49 = arith.constant 0 : index
      %75 = vector.load %arg4[%c0_48, %c0_49] : memref<1x8xf32, #tpu.memory_space<vmem>>, vector<1x8xf32>
      %76 = vector.broadcast %75 : vector<1x8xf32> to vector<256x8xf32>
      %77 = arith.addf %74, %76 : vector<256x8xf32>
      %cst_50 = arith.constant 0.000000e+00 : f32
      %78 = vector.broadcast %cst_50 : f32 to vector<256x8xf32>
      %79 = arith.maximumf %77, %78 : vector<256x8xf32>
      %80 = arith.truncf %79 : vector<256x8xf32> to vector<256x8xbf16>
      %81 = vector.shape_cast %80 : vector<256x8xbf16> to vector<16x16x8xbf16>
      %cst_51 = arith.constant 0.000000e+00 : bf16
      %82 = vector.broadcast %cst_51 : bf16 to vector<16x1x8xbf16>
      %cst_52 = arith.constant 0.000000e+00 : bf16
      %83 = vector.broadcast %cst_52 : bf16 to vector<16x1x8xbf16>
      %84 = tpu.concatenate %82, %81, %83 in 1 : vector<16x1x8xbf16>, vector<16x16x8xbf16>, vector<16x1x8xbf16> -> vector<16x18x8xbf16>
      %c1_53 = arith.constant 1 : index
      %c0_54 = arith.constant 0 : index
      %c0_55 = arith.constant 0 : index
      %85 = vector.load %arg12[%c1_53, %c0_54, %c0_55] : memref<18x18x8xbf16, #tpu.memory_space<vmem>>, vector<16x18x8xbf16>
      tpu.vector_store %arg12[%c1_53, %c0_54, %c0_55], %84 {strides = array<i32>} : memref<18x18x8xbf16, #tpu.memory_space<vmem>>, vector<16x18x8xbf16>,
      %cst_56 = arith.constant 0.000000e+00 : bf16
      %86 = vector.broadcast %cst_56 : bf16 to vector<1x18x8xbf16>
      %c0_57 = arith.constant 0 : index
      %c0_58 = arith.constant 0 : index
      %c0_59 = arith.constant 0 : index
      %87 = vector.load %arg12[%c0_57, %c0_58, %c0_59] : memref<18x18x8xbf16, #tpu.memory_space<vmem>>, vector<1x18x8xbf16>
      tpu.vector_store %arg12[%c0_57, %c0_58, %c0_59], %86 {strides = array<i32>} : memref<18x18x8xbf16, #tpu.memory_space<vmem>>, vector<1x18x8xbf16>,
      %c17 = arith.constant 17 : index
      %c0_60 = arith.constant 0 : index
      %c0_61 = arith.constant 0 : index
      %88 = vector.load %arg12[%c17, %c0_60, %c0_61] : memref<18x18x8xbf16, #tpu.memory_space<vmem>>, vector<1x18x8xbf16>
      tpu.vector_store %arg12[%c17, %c0_60, %c0_61], %86 {strides = array<i32>} : memref<18x18x8xbf16, #tpu.memory_space<vmem>>, vector<1x18x8xbf16>,
    } else {
    }
    %cst = arith.constant 0.000000e+00 : f32
    %5 = vector.broadcast %cst : f32 to vector<128x8xf32>
    %c1_i32 = arith.constant 1 : i32
    %6 = arith.muli %c1_i32, %1 : i32
    %c0_i32_1 = arith.constant 0 : i32
    %7 = arith.addi %6, %c0_i32_1 : i32
    %8 = arith.index_cast %7 : i32 to index
    %c0 = arith.constant 0 : index
    %c0_2 = arith.constant 0 : index
    %9 = vector.load %arg12[%8, %c0, %c0_2] : memref<18x18x8xbf16, #tpu.memory_space<vmem>>, vector<8x18x8xbf16>
    %10 = vector.extract_strided_slice %9 {offsets = [0, 0, 0], sizes = [8, 16, 8], strides = [1, 1, 1]} : vector<8x18x8xbf16> to vector<8x16x8xbf16>
    %11 = vector.extract_strided_slice %9 {offsets = [0, 1, 0], sizes = [8, 16, 8], strides = [1, 1, 1]} : vector<8x18x8xbf16> to vector<8x16x8xbf16>
    %12 = vector.extract_strided_slice %9 {offsets = [0, 2, 0], sizes = [8, 16, 8], strides = [1, 1, 1]} : vector<8x18x8xbf16> to vector<8x16x8xbf16>
    %13 = tpu.concatenate %10, %11, %12 in 2 : vector<8x16x8xbf16>, vector<8x16x8xbf16>, vector<8x16x8xbf16> -> vector<8x16x24xbf16>
    %14 = vector.shape_cast %13 : vector<8x16x24xbf16> to vector<128x24xbf16>
    %c0_3 = arith.constant 0 : index
    %c0_4 = arith.constant 0 : index
    %c0_5 = arith.constant 0 : index
    %15 = vector.load %arg5[%c0_3, %c0_4, %c0_5] : memref<3x24x8xbf16, #tpu.memory_space<vmem>>, vector<1x24x8xbf16>
    %16 = vector.shape_cast %15 : vector<1x24x8xbf16> to vector<24x8xbf16>
    %cst_6 = arith.constant dense<0.000000e+00> : vector<128x8xf32>
    %17 = tpu.matmul %14, %16, %cst_6 {dimension_numbers = #tpu.dot_dimension_numbers<[1], [0], [0], [1], [0, 0, 1, 1], [], []>} : vector<128x24xbf16>, vector<24x8xbf16>, vector<128x8xf32> -> vector<128x8xf32>
    %18 = arith.addf %5, %17 : vector<128x8xf32>
    %c1_i32_7 = arith.constant 1 : i32
    %19 = arith.muli %c1_i32_7, %1 : i32
    %c1_i32_8 = arith.constant 1 : i32
    %20 = arith.addi %19, %c1_i32_8 : i32
    %21 = arith.index_cast %20 : i32 to index
    %c0_9 = arith.constant 0 : index
    %c0_10 = arith.constant 0 : index
    %22 = vector.load %arg12[%21, %c0_9, %c0_10] : memref<18x18x8xbf16, #tpu.memory_space<vmem>>, vector<8x18x8xbf16>
    %23 = vector.extract_strided_slice %22 {offsets = [0, 0, 0], sizes = [8, 16, 8], strides = [1, 1, 1]} : vector<8x18x8xbf16> to vector<8x16x8xbf16>
    %24 = vector.extract_strided_slice %22 {offsets = [0, 1, 0], sizes = [8, 16, 8], strides = [1, 1, 1]} : vector<8x18x8xbf16> to vector<8x16x8xbf16>
    %25 = vector.extract_strided_slice %22 {offsets = [0, 2, 0], sizes = [8, 16, 8], strides = [1, 1, 1]} : vector<8x18x8xbf16> to vector<8x16x8xbf16>
    %26 = tpu.concatenate %23, %24, %25 in 2 : vector<8x16x8xbf16>, vector<8x16x8xbf16>, vector<8x16x8xbf16> -> vector<8x16x24xbf16>
    %27 = vector.shape_cast %26 : vector<8x16x24xbf16> to vector<128x24xbf16>
    %c1 = arith.constant 1 : index
    %c0_11 = arith.constant 0 : index
    %c0_12 = arith.constant 0 : index
    %28 = vector.load %arg5[%c1, %c0_11, %c0_12] : memref<3x24x8xbf16, #tpu.memory_space<vmem>>, vector<1x24x8xbf16>
    %29 = vector.shape_cast %28 : vector<1x24x8xbf16> to vector<24x8xbf16>
    %cst_13 = arith.constant dense<0.000000e+00> : vector<128x8xf32>
    %30 = tpu.matmul %27, %29, %cst_13 {dimension_numbers = #tpu.dot_dimension_numbers<[1], [0], [0], [1], [0, 0, 1, 1], [], []>} : vector<128x24xbf16>, vector<24x8xbf16>, vector<128x8xf32> -> vector<128x8xf32>
    %31 = arith.addf %18, %30 : vector<128x8xf32>
    %c1_i32_14 = arith.constant 1 : i32
    %32 = arith.muli %c1_i32_14, %1 : i32
    %c2_i32 = arith.constant 2 : i32
    %33 = arith.addi %32, %c2_i32 : i32
    %34 = arith.index_cast %33 : i32 to index
    %c0_15 = arith.constant 0 : index
    %c0_16 = arith.constant 0 : index
    %35 = vector.load %arg12[%34, %c0_15, %c0_16] : memref<18x18x8xbf16, #tpu.memory_space<vmem>>, vector<8x18x8xbf16>
    %36 = vector.extract_strided_slice %35 {offsets = [0, 0, 0], sizes = [8, 16, 8], strides = [1, 1, 1]} : vector<8x18x8xbf16> to vector<8x16x8xbf16>
    %37 = vector.extract_strided_slice %35 {offsets = [0, 1, 0], sizes = [8, 16, 8], strides = [1, 1, 1]} : vector<8x18x8xbf16> to vector<8x16x8xbf16>
    %38 = vector.extract_strided_slice %35 {offsets = [0, 2, 0], sizes = [8, 16, 8], strides = [1, 1, 1]} : vector<8x18x8xbf16> to vector<8x16x8xbf16>
    %39 = tpu.concatenate %36, %37, %38 in 2 : vector<8x16x8xbf16>, vector<8x16x8xbf16>, vector<8x16x8xbf16> -> vector<8x16x24xbf16>
    %40 = vector.shape_cast %39 : vector<8x16x24xbf16> to vector<128x24xbf16>
    %c2 = arith.constant 2 : index
    %c0_17 = arith.constant 0 : index
    %c0_18 = arith.constant 0 : index
    %41 = vector.load %arg5[%c2, %c0_17, %c0_18] : memref<3x24x8xbf16, #tpu.memory_space<vmem>>, vector<1x24x8xbf16>
    %42 = vector.shape_cast %41 : vector<1x24x8xbf16> to vector<24x8xbf16>
    %cst_19 = arith.constant dense<0.000000e+00> : vector<128x8xf32>
    %43 = tpu.matmul %40, %42, %cst_19 {dimension_numbers = #tpu.dot_dimension_numbers<[1], [0], [0], [1], [0, 0, 1, 1], [], []>} : vector<128x24xbf16>, vector<24x8xbf16>, vector<128x8xf32> -> vector<128x8xf32>
    %44 = arith.addf %31, %43 : vector<128x8xf32>
    %c0_20 = arith.constant 0 : index
    %c0_21 = arith.constant 0 : index
    %45 = vector.load %arg6[%c0_20, %c0_21] : memref<1x8xf32, #tpu.memory_space<vmem>>, vector<1x8xf32>
    %46 = vector.broadcast %45 : vector<1x8xf32> to vector<128x8xf32>
    %47 = arith.addf %44, %46 : vector<128x8xf32>
    %cst_22 = arith.constant 0.000000e+00 : f32
    %48 = vector.broadcast %cst_22 : f32 to vector<128x8xf32>
    %49 = arith.maximumf %47, %48 : vector<128x8xf32>
    %50 = arith.truncf %49 : vector<128x8xf32> to vector<128x8xbf16>
    %c0_23 = arith.constant 0 : index
    %c0_24 = arith.constant 0 : index
    %51 = vector.load %arg7[%c0_23, %c0_24] : memref<8x32xbf16, #tpu.memory_space<vmem>>, vector<8x32xbf16>
    %cst_25 = arith.constant dense<0.000000e+00> : vector<128x32xf32>
    %52 = tpu.matmul %50, %51, %cst_25 {dimension_numbers = #tpu.dot_dimension_numbers<[1], [0], [0], [1], [0, 0, 1, 1], [], []>} : vector<128x8xbf16>, vector<8x32xbf16>, vector<128x32xf32> -> vector<128x32xf32>
    %c0_26 = arith.constant 0 : index
    %c0_27 = arith.constant 0 : index
    %53 = vector.load %arg8[%c0_26, %c0_27] : memref<1x32xf32, #tpu.memory_space<vmem>>, vector<1x32xf32>
    %54 = vector.broadcast %53 : vector<1x32xf32> to vector<128x32xf32>
    %55 = arith.addf %52, %54 : vector<128x32xf32>
    %c0_28 = arith.constant 0 : index
    %56 = arith.index_cast %1 : i32 to index
    %c0_29 = arith.constant 0 : index
    %c0_30 = arith.constant 0 : index
    %57 = vector.load %arg2[%c0_28, %56, %c0_29, %c0_30] : memref<1x16x16x16xbf16, #tpu.memory_space<vmem>>, vector<1x8x16x16xbf16>
    %58 = vector.shape_cast %57 : vector<1x8x16x16xbf16> to vector<128x16xbf16>
    %c0_31 = arith.constant 0 : index
    %c0_32 = arith.constant 0 : index
    %59 = vector.load %arg9[%c0_31, %c0_32] : memref<16x32xbf16, #tpu.memory_space<vmem>>, vector<16x32xbf16>
    %cst_33 = arith.constant dense<0.000000e+00> : vector<128x32xf32>
    %60 = tpu.matmul %58, %59, %cst_33 {dimension_numbers = #tpu.dot_dimension_numbers<[1], [0], [0], [1], [0, 0, 1, 1], [], []>} : vector<128x16xbf16>, vector<16x32xbf16>, vector<128x32xf32> -> vector<128x32xf32>
    %c0_34 = arith.constant 0 : index
    %c0_35 = arith.constant 0 : index
    %61 = vector.load %arg10[%c0_34, %c0_35] : memref<1x32xf32, #tpu.memory_space<vmem>>, vector<1x32xf32>
    %62 = vector.broadcast %61 : vector<1x32xf32> to vector<128x32xf32>
    %63 = arith.addf %60, %62 : vector<128x32xf32>
    %64 = arith.addf %55, %63 : vector<128x32xf32>
    %cst_36 = arith.constant 0.000000e+00 : f32
    %65 = vector.broadcast %cst_36 : f32 to vector<128x32xf32>
    %66 = arith.maximumf %64, %65 : vector<128x32xf32>
    %67 = vector.shape_cast %66 : vector<128x32xf32> to vector<8x16x32xf32>
    %c0_37 = arith.constant 0 : index
    %c0_38 = arith.constant 0 : index
    %c0_39 = arith.constant 0 : index
    %c0_40 = arith.constant 0 : index
    %68 = vector.load %arg11[%c0_37, %c0_38, %c0_39, %c0_40] : memref<1x8x16x32xf32, #tpu.memory_space<vmem>>, vector<1x8x16x32xf32>
    %69 = vector.shape_cast %68 : vector<1x8x16x32xf32> to vector<8x16x32xf32>
    %70 = vector.shape_cast %67 : vector<8x16x32xf32> to vector<1x8x16x32xf32>
    tpu.vector_store %arg11[%c0_37, %c0_38, %c0_39, %c0_40], %70 {strides = array<i32>} : memref<1x8x16x32xf32, #tpu.memory_space<vmem>>, vector<1x8x16x32xf32>,
    return
  }
  func.func @transform_0(%arg0: i32, %arg1: i32) -> (i32, i32, i32, i32) {
    %c0_i32 = arith.constant 0 : i32
    %c0_i32_0 = arith.constant 0 : i32
    %c0_i32_1 = arith.constant 0 : i32
    %c0_i32_2 = arith.constant 0 : i32
    return %arg0, %c0_i32, %c0_i32_0, %c0_i32_1 : i32, i32, i32, i32
  }
  func.func @transform_1(%arg0: i32, %arg1: i32) -> (i32, i32) {
    %c0_i32 = arith.constant 0 : i32
    %c0_i32_0 = arith.constant 0 : i32
    %c0_i32_1 = arith.constant 0 : i32
    return %c0_i32, %c0_i32_0 : i32, i32
  }
  func.func @transform_2(%arg0: i32, %arg1: i32) -> (i32, i32) {
    %c0_i32 = arith.constant 0 : i32
    %c0_i32_0 = arith.constant 0 : i32
    %c0_i32_1 = arith.constant 0 : i32
    return %c0_i32, %c0_i32_0 : i32, i32
  }
  func.func @transform_3(%arg0: i32, %arg1: i32) -> (i32, i32, i32) {
    %c0_i32 = arith.constant 0 : i32
    %c0_i32_0 = arith.constant 0 : i32
    %c0_i32_1 = arith.constant 0 : i32
    %c0_i32_2 = arith.constant 0 : i32
    return %c0_i32, %c0_i32_0, %c0_i32_1 : i32, i32, i32
  }
  func.func @transform_4(%arg0: i32, %arg1: i32) -> (i32, i32) {
    %c0_i32 = arith.constant 0 : i32
    %c0_i32_0 = arith.constant 0 : i32
    %c0_i32_1 = arith.constant 0 : i32
    return %c0_i32, %c0_i32_0 : i32, i32
  }
  func.func @transform_5(%arg0: i32, %arg1: i32) -> (i32, i32) {
    %c0_i32 = arith.constant 0 : i32
    %c0_i32_0 = arith.constant 0 : i32
    %c0_i32_1 = arith.constant 0 : i32
    return %c0_i32, %c0_i32_0 : i32, i32
  }
  func.func @transform_6(%arg0: i32, %arg1: i32) -> (i32, i32) {
    %c0_i32 = arith.constant 0 : i32
    %c0_i32_0 = arith.constant 0 : i32
    %c0_i32_1 = arith.constant 0 : i32
    return %c0_i32, %c0_i32_0 : i32, i32
  }
  func.func @transform_7(%arg0: i32, %arg1: i32) -> (i32, i32) {
    %c0_i32 = arith.constant 0 : i32
    %c0_i32_0 = arith.constant 0 : i32
    %c0_i32_1 = arith.constant 0 : i32
    return %c0_i32, %c0_i32_0 : i32, i32
  }
  func.func @transform_8(%arg0: i32, %arg1: i32) -> (i32, i32) {
    %c0_i32 = arith.constant 0 : i32
    %c0_i32_0 = arith.constant 0 : i32
    %c0_i32_1 = arith.constant 0 : i32
    return %c0_i32, %c0_i32_0 : i32, i32
  }
  func.func @transform_9(%arg0: i32, %arg1: i32) -> (i32, i32, i32, i32) {
    %c0_i32 = arith.constant 0 : i32
    %c0_i32_0 = arith.constant 0 : i32
    %c0_i32_1 = arith.constant 0 : i32
    return %arg0, %arg1, %c0_i32, %c0_i32_0 : i32, i32, i32, i32
  }
}

</mosaic_0001>

<llo_original>
// kernel: bottleneck_forward.1
$region0: #{bottleneck_forward.1}
  #allocation0 [shape = 'u32[]', space=smem, size = 0x4, offset = 0x4, fixed_abs, tag = 'smem constant byte address 0x4 - core index']
  #allocation1 [shape = 'u32[72,128]{1,0:T(1,128)}', space=vmem, size = 0x9000, scoped, tag = 'internal scratch']
  #allocation2 [shape = 'bf16[18,18,8]{2,1,0:T(8,128)(2,1)}', space=vmem, size = 0x1b000, scoped, tag = 'scratch operand']
  %s0 = inlined_call_operand.vmem [shape: bf16[2,16,16,16], index: 0, kind: input, shape index: {}]
  %s1 = inlined_call_operand.vmem [shape: bf16[16,8], index: 1, kind: input, shape index: {}]
  %s2 = inlined_call_operand.vmem [shape: f32[1,8], index: 2, kind: input, shape index: {}]
  %s3 = inlined_call_operand.vmem [shape: bf16[3,24,8], index: 3, kind: input, shape index: {}]
  %s4 = inlined_call_operand.vmem [shape: f32[1,8], index: 4, kind: input, shape index: {}]
  %s5 = inlined_call_operand.vmem [shape: bf16[8,32], index: 5, kind: input, shape index: {}]
  %s6 = inlined_call_operand.vmem [shape: f32[1,32], index: 6, kind: input, shape index: {}]
  %s7 = inlined_call_operand.vmem [shape: bf16[16,32], index: 7, kind: input, shape index: {}]
  %s8 = inlined_call_operand.vmem [shape: f32[1,32], index: 8, kind: input, shape index: {}]
  %s9 = inlined_call_operand.hbm [shape: f32[2,16,16,32], index: 9, kind: output, shape index: {}]
  %s10 = sld [smem:[#allocation0]]
  $region73: #{bottleneck_forward.1} parent=0
    _
  %s12 = ssub.s32 1, %s10
  %s13 = scalar_select 0, %s12, %s10
  $region1: #{bottleneck_forward.1} parent=0
    #allocation3 [shape = 'u8[131072]{0}', space=vmem, size = 0x20000, scoped, tag = 'output window, operand 0']
    #allocation4 [shape = 's32[2]{0}', space=sflag, size = 0x8, scoped, tag = 'scoped memory for bottleneck_forward.1']
    %14 = vsyncpa [#allocation4], 0
    %s15 = scalar_lea.sflag [#allocation4], 1
    %16 = vsyncpa %s15, 0
    loop: start=0, step=1, limit=6
    $region2: #{bottleneck_forward.1} parent=1 // loop_pre_header
      _
    $region3: #{bottleneck_forward.1} parent=1 // loop_header
      %s18 = sphi 0, %s22
      %p19 = scmp.ge.s32.totalorder %s18, 6
      %s25 = sphi 0, %s37
      %s26 = sphi 0, %s33
      %s27 = sphi 0, %s25
      %s28 = sphi 0, %s26
      %s29 = sphi 0, %s27
      %s30 = sphi 0, %s28
      %s40 = sphi 0, %s42
      %s43 = sphi 0, %s40
      %s44 = sphi 0, %s43
      %s60 = sphi 0, %s44
      %s64 = sphi 0, %s64
      %s66 = sphi 0, %s64
      %s67 = sphi 0, %s66
      %s81 = sphi 0, %s67
      %s85 = sphi 0, %s85
      %s87 = sphi 0, %s85
      %s88 = sphi 0, %s87
      %s102 = sphi 0, %s88
      %s106 = sphi 0, %s106
      %s108 = sphi 0, %s106
      %s109 = sphi 0, %s108
      %s123 = sphi 0, %s109
      %s127 = sphi 0, %s127
      %s129 = sphi 0, %s127
      %s130 = sphi 0, %s129
      %s144 = sphi 0, %s130
      %s148 = sphi 0, %s148
      %s150 = sphi 0, %s148
      %s151 = sphi 0, %s150
      %s165 = sphi 0, %s151
      %s169 = sphi 0, %s169
      %s171 = sphi 0, %s169
      %s172 = sphi 0, %s171
      %s186 = sphi 0, %s172
      %s190 = sphi 0, %s190
      %s192 = sphi 0, %s190
      %s193 = sphi 0, %s192
      %s207 = sphi 0, %s193
      %s211 = sphi 0, %s211
      %s213 = sphi 0, %s211
      %s214 = sphi 0, %s213
      %s228 = sphi 0, %s214
      %s236 = sphi 0, %s238
      %s239 = sphi 0, %s236
      %s240 = sphi 0, %s239
      %s256 = sphi 0, %s240
    $region4: #{bottleneck_forward.1} parent=1 // loop_header_branch
      %21 = sbr.rel (%p19) target = $region8
    $region5: #{bottleneck_forward.1} parent=1 // loop_body
      %s23 = ssub.s32 %s18, 1
      %s24 = ssub.s32 %s18, 2
      %s31 = sadd.s32 1, %s26
      %p32 = scmp.ge.s32.totalorder %s31, 2
      %s33 = scalar_select %p32, 0, %s31
      %s34 = sadd.s32 1, %s25
      %s35 = scalar_select %p32, %s34, %s25
      %p36 = scmp.ge.s32.totalorder %s35, 2
      %s37 = scalar_select %p36, 0, %s35
      %s38 = ssub.s32 %s25, %s37
      %p39 = scmp.eq.s32.totalorder %s38, 0
      %s41 = sadd.s32 %s40, 1
      %s42 = scalar_select %p39, %s40, %s41
      %p45 = pneg %p39
      %p46 = scmp.eq.s32.totalorder %s18, 3
      %p47 = por %p45, %p46
      %p48 = scmp.ne.s32.totalorder %s40, %s43
      %p49 = scmp.eq.s32.totalorder %s18, 0
      %p50 = por %p48, %p49
      %p51 = scmp.ne.s32.totalorder %s40, %s43
      %p52 = scmp.eq.s32.totalorder %s23, 3
      %p53 = por %p51, %p52
      %p54 = scmp.ne.s32.totalorder %s43, %s44
      %p55 = scmp.eq.s32.totalorder %s23, 0
      %p56 = por %p54, %p55
      %p57 = scmp.ne.s32.totalorder %s43, %s44
      %p58 = scmp.eq.s32.totalorder %s24, 3
      %p59 = por %p57, %p58
      %p61 = scmp.ne.s32.totalorder %s44, %s60
      %p62 = scmp.eq.s32.totalorder %s24, 0
      %p63 = por %p61, %p62
      %s65 = sadd.s32 %s64, 1
      %p68 = scmp.eq.s32.totalorder %s18, 3
      %p69 = scmp.ne.s32.totalorder %s64, %s66
      %p70 = scmp.eq.s32.totalorder %s18, 0
      %p71 = por %p69, %p70
      %p72 = scmp.ne.s32.totalorder %s64, %s66
      %p73 = scmp.eq.s32.totalorder %s23, 3
      %p74 = por %p72, %p73
      %p75 = scmp.ne.s32.totalorder %s66, %s67
      %p76 = scmp.eq.s32.totalorder %s23, 0
      %p77 = por %p75, %p76
      %p78 = scmp.ne.s32.totalorder %s66, %s67
      %p79 = scmp.eq.s32.totalorder %s24, 3
      %p80 = por %p78, %p79
      %p82 = scmp.ne.s32.totalorder %s67, %s81
      %p83 = scmp.eq.s32.totalorder %s24, 0
      %p84 = por %p82, %p83
      %s86 = sadd.s32 %s85, 1
      %p89 = scmp.eq.s32.totalorder %s18, 3
      %p90 = scmp.ne.s32.totalorder %s85, %s87
      %p91 = scmp.eq.s32.totalorder %s18, 0
      %p92 = por %p90, %p91
      %p93 = scmp.ne.s32.totalorder %s85, %s87
      %p94 = scmp.eq.s32.totalorder %s23, 3
      %p95 = por %p93, %p94
      %p96 = scmp.ne.s32.totalorder %s87, %s88
      %p97 = scmp.eq.s32.totalorder %s23, 0
      %p98 = por %p96, %p97
      %p99 = scmp.ne.s32.totalorder %s87, %s88
      %p100 = scmp.eq.s32.totalorder %s24, 3
      %p101 = por %p99, %p100
      %p103 = scmp.ne.s32.totalorder %s88, %s102
      %p104 = scmp.eq.s32.totalorder %s24, 0
      %p105 = por %p103, %p104
      %s107 = sadd.s32 %s106, 1
      %p110 = scmp.eq.s32.totalorder %s18, 3
      %p111 = scmp.ne.s32.totalorder %s106, %s108
      %p112 = scmp.eq.s32.totalorder %s18, 0
      %p113 = por %p111, %p112
      %p114 = scmp.ne.s32.totalorder %s106, %s108
      %p115 = scmp.eq.s32.totalorder %s23, 3
      %p116 = por %p114, %p115
      %p117 = scmp.ne.s32.totalorder %s108, %s109
      %p118 = scmp.eq.s32.totalorder %s23, 0
      %p119 = por %p117, %p118
      %p120 = scmp.ne.s32.totalorder %s108, %s109
      %p121 = scmp.eq.s32.totalorder %s24, 3
      %p122 = por %p120, %p121
      %p124 = scmp.ne.s32.totalorder %s109, %s123
      %p125 = scmp.eq.s32.totalorder %s24, 0
      %p126 = por %p124, %p125
      %s128 = sadd.s32 %s127, 1
      %p131 = scmp.eq.s32.totalorder %s18, 3
      %p132 = scmp.ne.s32.totalorder %s127, %s129
      %p133 = scmp.eq.s32.totalorder %s18, 0
      %p134 = por %p132, %p133
      %p135 = scmp.ne.s32.totalorder %s127, %s129
      %p136 = scmp.eq.s32.totalorder %s23, 3
      %p137 = por %p135, %p136
      %p138 = scmp.ne.s32.totalorder %s129, %s130
      %p139 = scmp.eq.s32.totalorder %s23, 0
      %p140 = por %p138, %p139
      %p141 = scmp.ne.s32.totalorder %s129, %s130
      %p142 = scmp.eq.s32.totalorder %s24, 3
      %p143 = por %p141, %p142
      %p145 = scmp.ne.s32.totalorder %s130, %s144
      %p146 = scmp.eq.s32.totalorder %s24, 0
      %p147 = por %p145, %p146
      %s149 = sadd.s32 %s148, 1
      %p152 = scmp.eq.s32.totalorder %s18, 3
      %p153 = scmp.ne.s32.totalorder %s148, %s150
      %p154 = scmp.eq.s32.totalorder %s18, 0
      %p155 = por %p153, %p154
      %p156 = scmp.ne.s32.totalorder %s148, %s150
      %p157 = scmp.eq.s32.totalorder %s23, 3
      %p158 = por %p156, %p157
      %p159 = scmp.ne.s32.totalorder %s150, %s151
      %p160 = scmp.eq.s32.totalorder %s23, 0
      %p161 = por %p159, %p160
      %p162 = scmp.ne.s32.totalorder %s150, %s151
      %p163 = scmp.eq.s32.totalorder %s24, 3
      %p164 = por %p162, %p163
      %p166 = scmp.ne.s32.totalorder %s151, %s165
      %p167 = scmp.eq.s32.totalorder %s24, 0
      %p168 = por %p166, %p167
      %s170 = sadd.s32 %s169, 1
      %p173 = scmp.eq.s32.totalorder %s18, 3
      %p174 = scmp.ne.s32.totalorder %s169, %s171
      %p175 = scmp.eq.s32.totalorder %s18, 0
      %p176 = por %p174, %p175
      %p177 = scmp.ne.s32.totalorder %s169, %s171
      %p178 = scmp.eq.s32.totalorder %s23, 3
      %p179 = por %p177, %p178
      %p180 = scmp.ne.s32.totalorder %s171, %s172
      %p181 = scmp.eq.s32.totalorder %s23, 0
      %p182 = por %p180, %p181
      %p183 = scmp.ne.s32.totalorder %s171, %s172
      %p184 = scmp.eq.s32.totalorder %s24, 3
      %p185 = por %p183, %p184
      %p187 = scmp.ne.s32.totalorder %s172, %s186
      %p188 = scmp.eq.s32.totalorder %s24, 0
      %p189 = por %p187, %p188
      %s191 = sadd.s32 %s190, 1
      %p194 = scmp.eq.s32.totalorder %s18, 3
      %p195 = scmp.ne.s32.totalorder %s190, %s192
      %p196 = scmp.eq.s32.totalorder %s18, 0
      %p197 = por %p195, %p196
      %p198 = scmp.ne.s32.totalorder %s190, %s192
      %p199 = scmp.eq.s32.totalorder %s23, 3
      %p200 = por %p198, %p199
      %p201 = scmp.ne.s32.totalorder %s192, %s193
      %p202 = scmp.eq.s32.totalorder %s23, 0
      %p203 = por %p201, %p202
      %p204 = scmp.ne.s32.totalorder %s192, %s193
      %p205 = scmp.eq.s32.totalorder %s24, 3
      %p206 = por %p204, %p205
      %p208 = scmp.ne.s32.totalorder %s193, %s207
      %p209 = scmp.eq.s32.totalorder %s24, 0
      %p210 = por %p208, %p209
      %s212 = sadd.s32 %s211, 1
      %p215 = scmp.eq.s32.totalorder %s18, 3
      %p216 = scmp.ne.s32.totalorder %s211, %s213
      %p217 = scmp.eq.s32.totalorder %s18, 0
      %p218 = por %p216, %p217
      %p219 = scmp.ne.s32.totalorder %s211, %s213
      %p220 = scmp.eq.s32.totalorder %s23, 3
      %p221 = por %p219, %p220
      %p222 = scmp.ne.s32.totalorder %s213, %s214
      %p223 = scmp.eq.s32.totalorder %s23, 0
      %p224 = por %p222, %p223
      %p225 = scmp.ne.s32.totalorder %s213, %s214
      %p226 = scmp.eq.s32.totalorder %s24, 3
      %p227 = por %p225, %p226
      %p229 = scmp.ne.s32.totalorder %s214, %s228
      %p230 = scmp.eq.s32.totalorder %s24, 0
      %p231 = por %p229, %p230
      %s232 = ssub.s32 %s25, %s37
      %s233 = ssub.s32 %s26, %s33
      %s234 = sor.u32 %s232, %s233
      %p235 = scmp.eq.s32.totalorder %s234, 0
      %s237 = sadd.s32 %s236, 1
      %s238 = scalar_select %p235, %s236, %s237
      %p241 = pneg %p235
      %p242 = scmp.eq.s32.totalorder %s18, 3
      %p243 = por %p241, %p242
      %p244 = scmp.ne.s32.totalorder %s236, %s239
      %p245 = scmp.eq.s32.totalorder %s18, 0
      %p246 = por %p244, %p245
      %p247 = scmp.ne.s32.totalorder %s236, %s239
      %p248 = scmp.eq.s32.totalorder %s23, 3
      %p249 = por %p247, %p248
      %p250 = scmp.ne.s32.totalorder %s239, %s240
      %p251 = scmp.eq.s32.totalorder %s23, 0
      %p252 = por %p250, %p251
      %p253 = scmp.ne.s32.totalorder %s239, %s240
      %p254 = scmp.eq.s32.totalorder %s24, 3
      %p255 = por %p253, %p254
      %p257 = scmp.ne.s32.totalorder %s240, %s256
      %p258 = scmp.eq.s32.totalorder %s24, 0
      %p259 = por %p257, %p258
      %p260 = scmp.le.s32.totalorder 1, %s18
      %p261 = scmp.lt.s32.totalorder %s18, 5
      %p262 = pnand %p260, %p261
      %p263 = pneg %p262
      // Predicated region
      $region9: #{bottleneck_forward.1} parent=5 // pred_check
        _
      $region10: #{bottleneck_forward.1} parent=5 // pred_check_branch
        %265 = sbr.rel (%p262) target = $region12
      $region11: #{bottleneck_forward.1} parent=5 // pred_region
        %s266 = ssub.s32 %s18, 1
        // Predicated region
        $region13: #{bottleneck_forward.1} parent=11 // pred_check
          %p267 = pneg %p77
        $region14: #{bottleneck_forward.1} parent=11 // pred_check_branch
          %269 = sbr.rel (%p267) target = $region16
        $region15: #{bottleneck_forward.1} parent=11 // pred_region
          _
        $region16: #{bottleneck_forward.1} parent=11 // pred_fallthru
          _
        // Predicated region
        $region17: #{bottleneck_forward.1} parent=11 // pred_check
          %p270 = pneg %p98
        $region18: #{bottleneck_forward.1} parent=11 // pred_check_branch
          %272 = sbr.rel (%p270) target = $region20
        $region19: #{bottleneck_forward.1} parent=11 // pred_region
          _
        $region20: #{bottleneck_forward.1} parent=11 // pred_fallthru
          _
        // Predicated region
        $region21: #{bottleneck_forward.1} parent=11 // pred_check
          %p273 = pneg %p119
        $region22: #{bottleneck_forward.1} parent=11 // pred_check_branch
          %275 = sbr.rel (%p273) target = $region24
        $region23: #{bottleneck_forward.1} parent=11 // pred_region
          _
        $region24: #{bottleneck_forward.1} parent=11 // pred_fallthru
          _
        // Predicated region
        $region25: #{bottleneck_forward.1} parent=11 // pred_check
          %p276 = pneg %p140
        $region26: #{bottleneck_forward.1} parent=11 // pred_check_branch
          %278 = sbr.rel (%p276) target = $region28
        $region27: #{bottleneck_forward.1} parent=11 // pred_region
          _
        $region28: #{bottleneck_forward.1} parent=11 // pred_fallthru
          _
        // Predicated region
        $region29: #{bottleneck_forward.1} parent=11 // pred_check
          %p279 = pneg %p161
        $region30: #{bottleneck_forward.1} parent=11 // pred_check_branch
          %281 = sbr.rel (%p279) target = $region32
        $region31: #{bottleneck_forward.1} parent=11 // pred_region
          _
        $region32: #{bottleneck_forward.1} parent=11 // pred_fallthru
          _
        // Predicated region
        $region33: #{bottleneck_forward.1} parent=11 // pred_check
          %p282 = pneg %p182
        $region34: #{bottleneck_forward.1} parent=11 // pred_check_branch
          %284 = sbr.rel (%p282) target = $region36
        $region35: #{bottleneck_forward.1} parent=11 // pred_region
          _
        $region36: #{bottleneck_forward.1} parent=11 // pred_fallthru
          _
        // Predicated region
        $region37: #{bottleneck_forward.1} parent=11 // pred_check
          %p285 = pneg %p203
        $region38: #{bottleneck_forward.1} parent=11 // pred_check_branch
          %287 = sbr.rel (%p285) target = $region40
        $region39: #{bottleneck_forward.1} parent=11 // pred_region
          _
        $region40: #{bottleneck_forward.1} parent=11 // pred_fallthru
          _
        // Predicated region
        $region41: #{bottleneck_forward.1} parent=11 // pred_check
          %p288 = pneg %p224
        $region42: #{bottleneck_forward.1} parent=11 // pred_check_branch
          %290 = sbr.rel (%p288) target = $region44
        $region43: #{bottleneck_forward.1} parent=11 // pred_region
          _
        $region44: #{bottleneck_forward.1} parent=11 // pred_fallthru
          _
      $region12: #{bottleneck_forward.1} parent=5 // pred_fallthru
        _
      %p291 = scmp.lt.s32.totalorder %s18, 4
      // Predicated region
      $region45: #{bottleneck_forward.1} parent=5 // pred_check
        %p292 = pneg %p291
      $region46: #{bottleneck_forward.1} parent=5 // pred_check_branch
        %294 = sbr.rel (%p292) target = $region48
      $region47: #{bottleneck_forward.1} parent=5 // pred_region
        // Predicated region
        $region49: #{bottleneck_forward.1} parent=47 // pred_check
          %p295 = pneg %p50
        $region50: #{bottleneck_forward.1} parent=47 // pred_check_branch
          %297 = sbr.rel (%p295) target = $region52
        $region51: #{bottleneck_forward.1} parent=47 // pred_region
          %p298 = scmp.lt.s32.totalorder %s25, 1
          %s299 = scalar_select %p298, %s25, 1
          %s300 = smul.addr %s299, 32
          %s301 = smul.addr %s300, 4
          %s302 = scalar_lea.vmem %s0, %s301
        $region52: #{bottleneck_forward.1} parent=47 // pred_fallthru
          _
      $region48: #{bottleneck_forward.1} parent=5 // pred_fallthru
        _
      %p303 = scmp.le.s32.totalorder 1, %s18
      %p304 = scmp.lt.s32.totalorder %s18, 5
      %p305 = pnand %p303, %p304
      %p306 = pneg %p305
      // Predicated region
      $region53: #{bottleneck_forward.1} parent=5 // pred_check
        _
      $region54: #{bottleneck_forward.1} parent=5 // pred_check_branch
        %308 = sbr.rel (%p305) target = $region56
      $region55: #{bottleneck_forward.1} parent=5 // pred_region
        %s309 = ssub.s32 %s18, 1
        %p310 = scmp.lt.s32.totalorder %s27, 1
        %s311 = scalar_select %p310, %s27, 1
        %s312 = smul.addr %s311, 32
        %s313 = smul.addr %s312, 4
        %s314 = scalar_lea.vmem %s0, %s313
        %p315 = pneg %p56
        %p316 = pneg %p53
        %p317 = pneg %p77
        %p318 = pneg %p74
        %p319 = pneg %p98
        %p320 = pneg %p95
        %p321 = pneg %p119
        %p322 = pneg %p116
        %p323 = pneg %p140
        %p324 = pneg %p137
        %p325 = pneg %p161
        %p326 = pneg %p158
        %p327 = pneg %p182
        %p328 = pneg %p179
        %p329 = pneg %p203
        %p330 = pneg %p200
        %p331 = pneg %p224
        %p332 = pneg %p221
        %p333 = pneg %p252
        %p334 = pneg %p249
        %s335 = sand.u32 %s239, 1
        %s336 = scalar_lea.sflag [#allocation4], %s335
        %s337 = sand.u32 %s239, 1
        %s338 = smul.addr %s337, 128
        %s339 = scalar_lea.vmem [#allocation3], %s338
        %p340 = scmp.lt.s32.totalorder %s27, 1
        %s341 = scalar_select %p340, %s27, 1
        %s342 = smul.addr %s341, 32
        %s343 = smul.addr %s342, 4
        %s344 = scalar_lea.vmem %s0, %s343
        %s345 = smul.u32 8, %s28
        %s347 = smul.u32 %s28, 8
        %p348 = scmp.eq.s32.totalorder %s28, 0
        // Predicated region
        $region57: #{bottleneck_forward.1} parent=55 // pred_check
          %p349 = pneg %p348
        $region58: #{bottleneck_forward.1} parent=55 // pred_check_branch
          %351 = sbr.rel (%p349) target = $region60
        $region59: #{bottleneck_forward.1} parent=55 // pred_region
          %v352 = vld [vmem:[%s344] sm:$0xf]
          %v353 = vld [vmem:[%s344 + $0x4] sm:$0xf]
          %v354 = vld [vmem:[%s344 + $0x8] sm:$0xf]
          %v355 = vld [vmem:[%s344 + $0xc] sm:$0xf]
          %v356 = vld [vmem:[%s344 + $0x10] sm:$0xf]
          %v357 = vld [vmem:[%s344 + $0x14] sm:$0xf]
          %v358 = vld [vmem:[%s344 + $0x18] sm:$0xf]
          %v359 = vld [vmem:[%s344 + $0x1c] sm:$0xf]
          %v360 = vld [vmem:[%s344 + $0x20] sm:$0xf]
          %v361 = vld [vmem:[%s344 + $0x24] sm:$0xf]
          %v362 = vld [vmem:[%s344 + $0x28] sm:$0xf]
          %v363 = vld [vmem:[%s344 + $0x2c] sm:$0xf]
          %v364 = vld [vmem:[%s344 + $0x30] sm:$0xf]
          %v365 = vld [vmem:[%s344 + $0x34] sm:$0xf]
          %v366 = vld [vmem:[%s344 + $0x38] sm:$0xf]
          %v367 = vld [vmem:[%s344 + $0x3c] sm:$0xf]
          %v368 = vld [vmem:[%s344 + $0x40] sm:$0xf]
          %v369 = vld [vmem:[%s344 + $0x44] sm:$0xf]
          %v370 = vld [vmem:[%s344 + $0x48] sm:$0xf]
          %v371 = vld [vmem:[%s344 + $0x4c] sm:$0xf]
          %v372 = vld [vmem:[%s344 + $0x50] sm:$0xf]
          %v373 = vld [vmem:[%s344 + $0x54] sm:$0xf]
          %v374 = vld [vmem:[%s344 + $0x58] sm:$0xf]
          %v375 = vld [vmem:[%s344 + $0x5c] sm:$0xf]
          %v376 = vld [vmem:[%s344 + $0x60] sm:$0xf]
          %v377 = vld [vmem:[%s344 + $0x64] sm:$0xf]
          %v378 = vld [vmem:[%s344 + $0x68] sm:$0xf]
          %v379 = vld [vmem:[%s344 + $0x6c] sm:$0xf]
          %v380 = vld [vmem:[%s344 + $0x70] sm:$0xf]
          %v381 = vld [vmem:[%s344 + $0x74] sm:$0xf]
          %v382 = vld [vmem:[%s344 + $0x78] sm:$0xf]
          %v383 = vld [vmem:[%s344 + $0x7c] sm:$0xf]
          %v384 = vld [vmem:[%s1] sm:$0xf]
          %v385 = vld [vmem:[%s1 + $0x4] sm:$0xf]
          %v386 = vld [vmem:[%s2] sm:$0x1]
          %v388 = vperm.slane %v386, 0
          %v422 = vunpack.c.l.b16 %v352
          %v423 = vunpack.c.l.b16 %v353
          %v424 = vunpack.c.l.b16 %v354
          %v425 = vunpack.c.l.b16 %v355
          %v426 = vunpack.c.l.b16 %v356
          %v427 = vunpack.c.l.b16 %v357
          %v428 = vunpack.c.l.b16 %v358
          %v429 = vunpack.c.l.b16 %v359
          %v430 = vunpack.c.l.b16 %v360
          %v431 = vunpack.c.l.b16 %v361
          %v432 = vunpack.c.l.b16 %v362
          %v433 = vunpack.c.l.b16 %v363
          %v434 = vunpack.c.l.b16 %v364
          %v435 = vunpack.c.l.b16 %v365
          %v436 = vunpack.c.l.b16 %v366
          %v437 = vunpack.c.l.b16 %v367
          %v438 = vunpack.c.l.b16 %v368
          %v439 = vunpack.c.l.b16 %v369
          %v440 = vunpack.c.l.b16 %v370
          %v441 = vunpack.c.l.b16 %v371
          %v442 = vunpack.c.l.b16 %v372
          %v443 = vunpack.c.l.b16 %v373
          %v444 = vunpack.c.l.b16 %v374
          %v445 = vunpack.c.l.b16 %v375
          %v446 = vunpack.c.l.b16 %v376
          %v447 = vunpack.c.l.b16 %v377
          %v448 = vunpack.c.l.b16 %v378
          %v449 = vunpack.c.l.b16 %v379
          %v450 = vunpack.c.l.b16 %v380
          %v451 = vunpack.c.l.b16 %v381
          %v452 = vunpack.c.l.b16 %v382
          %v453 = vunpack.c.l.b16 %v383
          %v454 = vpack.c.b16 %v423, %v422
          %v455 = vpack.c.b16 %v425, %v424
          %v456 = vpack.c.b16 %v427, %v426
          %v457 = vpack.c.b16 %v429, %v428
          %v458 = vpack.c.b16 %v431, %v430
          %v459 = vpack.c.b16 %v433, %v432
          %v460 = vpack.c.b16 %v435, %v434
          %v461 = vpack.c.b16 %v437, %v436
          %v462 = vpack.c.b16 %v439, %v438
          %v463 = vpack.c.b16 %v441, %v440
          %v464 = vpack.c.b16 %v443, %v442
          %v465 = vpack.c.b16 %v445, %v444
          %v466 = vpack.c.b16 %v447, %v446
          %v467 = vpack.c.b16 %v449, %v448
          %v468 = vpack.c.b16 %v451, %v450
          %v469 = vpack.c.b16 %v453, %v452
          %v472 = vunpack.c.l.b16 %v384
          %v473 = vunpack.c.l.b16 %v385
          %v474 = vpack.c.b16 %v473, %v472
          %vm476 = vcmask 130048
          %v478 = vsel %vm476, %v454, 0
          %v481 = vsel %vm476, %v455, 0
          %v484 = vsel %vm476, %v456, 0
          %v487 = vsel %vm476, %v457, 0
          %v490 = vsel %vm476, %v458, 0
          %v493 = vsel %vm476, %v459, 0
          %v496 = vsel %vm476, %v460, 0
          %v499 = vsel %vm476, %v461, 0
          %v502 = vsel %vm476, %v462, 0
          %v505 = vsel %vm476, %v463, 0
          %v508 = vsel %vm476, %v464, 0
          %v511 = vsel %vm476, %v465, 0
          %v514 = vsel %vm476, %v466, 0
          %v517 = vsel %vm476, %v467, 0
          %v520 = vsel %vm476, %v468, 0
          %v523 = vsel %vm476, %v469, 0
          %525 = vmatpush.bf16.msra.mxu0 0
          %526 = vmatpush.bf16.msra.mxu0 0
          %527 = vmatpush.bf16.msra.mxu0 0
          %528 = vmatpush.bf16.msra.mxu0 0
          %529 = vmatpush.bf16.msra.mxu0 0
          %530 = vmatpush.bf16.msra.mxu0 0
          %531 = vmatpush.bf16.msra.mxu0 0
          %532 = vmatpush.bf16.msra.mxu0 %v474
          %533 = vmatmul.bf16.gmra.mxu0 %v478
          %v534 = vpop.f32.mrf.mxu0
          %v535 = vadd.f32 %v388, %v534
          %v536 = vpop.f32.mrf.mxu0
          %v537 = vadd.f32 %v388, %v536
          %538 = vmatmul.bf16.gmra.mxu0 %v481
          %v539 = vpop.f32.mrf.mxu0
          %v540 = vadd.f32 %v388, %v539
          %v541 = vpop.f32.mrf.mxu0
          %v542 = vadd.f32 %v388, %v541
          %543 = vmatmul.bf16.gmra.mxu0 %v484
          %v544 = vpop.f32.mrf.mxu0
          %v545 = vadd.f32 %v388, %v544
          %v546 = vpop.f32.mrf.mxu0
          %v547 = vadd.f32 %v388, %v546
          %548 = vmatmul.bf16.gmra.mxu0 %v487
          %v549 = vpop.f32.mrf.mxu0
          %v550 = vadd.f32 %v388, %v549
          %v551 = vpop.f32.mrf.mxu0
          %v552 = vadd.f32 %v388, %v551
          %553 = vmatmul.bf16.gmra.mxu0 %v490
          %v554 = vpop.f32.mrf.mxu0
          %v555 = vadd.f32 %v388, %v554
          %v556 = vpop.f32.mrf.mxu0
          %v557 = vadd.f32 %v388, %v556
          %558 = vmatmul.bf16.gmra.mxu0 %v493
          %v559 = vpop.f32.mrf.mxu0
          %v560 = vadd.f32 %v388, %v559
          %v561 = vpop.f32.mrf.mxu0
          %v562 = vadd.f32 %v388, %v561
          %563 = vmatmul.bf16.gmra.mxu0 %v496
          %v564 = vpop.f32.mrf.mxu0
          %v565 = vadd.f32 %v388, %v564
          %v566 = vpop.f32.mrf.mxu0
          %v567 = vadd.f32 %v388, %v566
          %568 = vmatmul.bf16.gmra.mxu0 %v499
          %v569 = vpop.f32.mrf.mxu0
          %v570 = vadd.f32 %v388, %v569
          %v571 = vpop.f32.mrf.mxu0
          %v572 = vadd.f32 %v388, %v571
          %573 = vmatmul.bf16.gmra.mxu0 %v502
          %v574 = vpop.f32.mrf.mxu0
          %v575 = vadd.f32 %v388, %v574
          %v576 = vpop.f32.mrf.mxu0
          %v577 = vadd.f32 %v388, %v576
          %578 = vmatmul.bf16.gmra.mxu0 %v505
          %v579 = vpop.f32.mrf.mxu0
          %v580 = vadd.f32 %v388, %v579
          %v581 = vpop.f32.mrf.mxu0
          %v582 = vadd.f32 %v388, %v581
          %583 = vmatmul.bf16.gmra.mxu0 %v508
          %v584 = vpop.f32.mrf.mxu0
          %v585 = vadd.f32 %v388, %v584
          %v586 = vpop.f32.mrf.mxu0
          %v587 = vadd.f32 %v388, %v586
          %588 = vmatmul.bf16.gmra.mxu0 %v511
          %v589 = vpop.f32.mrf.mxu0
          %v590 = vadd.f32 %v388, %v589
          %v591 = vpop.f32.mrf.mxu0
          %v592 = vadd.f32 %v388, %v591
          %593 = vmatmul.bf16.gmra.mxu0 %v514
          %v594 = vpop.f32.mrf.mxu0
          %v595 = vadd.f32 %v388, %v594
          %v596 = vpop.f32.mrf.mxu0
          %v597 = vadd.f32 %v388, %v596
          %598 = vmatmul.bf16.gmra.mxu0 %v517
          %v599 = vpop.f32.mrf.mxu0
          %v600 = vadd.f32 %v388, %v599
          %v601 = vpop.f32.mrf.mxu0
          %v602 = vadd.f32 %v388, %v601
          %603 = vmatmul.bf16.gmra.mxu0 %v520
          %v604 = vpop.f32.mrf.mxu0
          %v605 = vadd.f32 %v388, %v604
          %v606 = vpop.f32.mrf.mxu0
          %v607 = vadd.f32 %v388, %v606
          %608 = vmatmul.bf16.gmra.mxu0 %v523
          %v609 = vpop.f32.mrf.mxu0
          %v610 = vadd.f32 %v388, %v609
          %v611 = vpop.f32.mrf.mxu0
          %v612 = vadd.f32 %v388, %v611
          %613 = vdwg.mxu0
          %v614 = vmax.f32 %v535, 0.0
          %v615 = vmax.f32 %v537, 0.0
          %v616 = vmax.f32 %v540, 0.0
          %v617 = vmax.f32 %v542, 0.0
          %v618 = vmax.f32 %v545, 0.0
          %v619 = vmax.f32 %v547, 0.0
          %v620 = vmax.f32 %v550, 0.0
          %v621 = vmax.f32 %v552, 0.0
          %v622 = vmax.f32 %v555, 0.0
          %v623 = vmax.f32 %v557, 0.0
          %v624 = vmax.f32 %v560, 0.0
          %v625 = vmax.f32 %v562, 0.0
          %v626 = vmax.f32 %v565, 0.0
          %v627 = vmax.f32 %v567, 0.0
          %v628 = vmax.f32 %v570, 0.0
          %v629 = vmax.f32 %v572, 0.0
          %v630 = vmax.f32 %v575, 0.0
          %v631 = vmax.f32 %v577, 0.0
          %v632 = vmax.f32 %v580, 0.0
          %v633 = vmax.f32 %v582, 0.0
          %v634 = vmax.f32 %v585, 0.0
          %v635 = vmax.f32 %v587, 0.0
          %v636 = vmax.f32 %v590, 0.0
          %v637 = vmax.f32 %v592, 0.0
          %v638 = vmax.f32 %v595, 0.0
          %v639 = vmax.f32 %v597, 0.0
          %v640 = vmax.f32 %v600, 0.0
          %v641 = vmax.f32 %v602, 0.0
          %v642 = vmax.f32 %v605, 0.0
          %v643 = vmax.f32 %v607, 0.0
          %v644 = vmax.f32 %v610, 0.0
          %v645 = vmax.f32 %v612, 0.0
          %v646 = vpack.c.bf16 %v614, %v614
          %v647 = vpack.c.bf16 %v615, %v615
          %v648 = vpack.c.bf16 %v616, %v616
          %v649 = vpack.c.bf16 %v617, %v617
          %v650 = vpack.c.bf16 %v618, %v618
          %v651 = vpack.c.bf16 %v619, %v619
          %v652 = vpack.c.bf16 %v620, %v620
          %v653 = vpack.c.bf16 %v621, %v621
          %v654 = vpack.c.bf16 %v622, %v622
          %v655 = vpack.c.bf16 %v623, %v623
          %v656 = vpack.c.bf16 %v624, %v624
          %v657 = vpack.c.bf16 %v625, %v625
          %v658 = vpack.c.bf16 %v626, %v626
          %v659 = vpack.c.bf16 %v627, %v627
          %v660 = vpack.c.bf16 %v628, %v628
          %v661 = vpack.c.bf16 %v629, %v629
          %v662 = vpack.c.bf16 %v630, %v630
          %v663 = vpack.c.bf16 %v631, %v631
          %v664 = vpack.c.bf16 %v632, %v632
          %v665 = vpack.c.bf16 %v633, %v633
          %v666 = vpack.c.bf16 %v634, %v634
          %v667 = vpack.c.bf16 %v635, %v635
          %v668 = vpack.c.bf16 %v636, %v636
          %v669 = vpack.c.bf16 %v637, %v637
          %v670 = vpack.c.bf16 %v638, %v638
          %v671 = vpack.c.bf16 %v639, %v639
          %v672 = vpack.c.bf16 %v640, %v640
          %v673 = vpack.c.bf16 %v641, %v641
          %v674 = vpack.c.bf16 %v642, %v642
          %v675 = vpack.c.bf16 %v643, %v643
          %v676 = vpack.c.bf16 %v644, %v644
          %v677 = vpack.c.bf16 %v645, %v645
          %v710 = vunpack.c.l.b16 %v646
          %v711 = vunpack.c.l.b16 %v647
          %v712 = vunpack.c.l.b16 %v648
          %v713 = vunpack.c.l.b16 %v649
          %v714 = vunpack.c.l.b16 %v650
          %v715 = vunpack.c.l.b16 %v651
          %v716 = vunpack.c.l.b16 %v652
          %v717 = vunpack.c.l.b16 %v653
          %v718 = vunpack.c.l.b16 %v654
          %v719 = vunpack.c.l.b16 %v655
          %v720 = vunpack.c.l.b16 %v656
          %v721 = vunpack.c.l.b16 %v657
          %v722 = vunpack.c.l.b16 %v658
          %v723 = vunpack.c.l.b16 %v659
          %v724 = vunpack.c.l.b16 %v660
          %v725 = vunpack.c.l.b16 %v661
          %v726 = vunpack.c.l.b16 %v662
          %v727 = vunpack.c.l.b16 %v663
          %v728 = vunpack.c.l.b16 %v664
          %v729 = vunpack.c.l.b16 %v665
          %v730 = vunpack.c.l.b16 %v666
          %v731 = vunpack.c.l.b16 %v667
          %v732 = vunpack.c.l.b16 %v668
          %v733 = vunpack.c.l.b16 %v669
          %v734 = vunpack.c.l.b16 %v670
          %v735 = vunpack.c.l.b16 %v671
          %v736 = vunpack.c.l.b16 %v672
          %v737 = vunpack.c.l.b16 %v673
          %v738 = vunpack.c.l.b16 %v674
          %v739 = vunpack.c.l.b16 %v675
          %v740 = vunpack.c.l.b16 %v676
          %v741 = vunpack.c.l.b16 %v677
          %v742 = vpack.c.b16 %v711, %v710
          %v743 = vpack.c.b16 %v713, %v712
          %v744 = vpack.c.b16 %v715, %v714
          %v745 = vpack.c.b16 %v717, %v716
          %v746 = vpack.c.b16 %v719, %v718
          %v747 = vpack.c.b16 %v721, %v720
          %v748 = vpack.c.b16 %v723, %v722
          %v749 = vpack.c.b16 %v725, %v724
          %v750 = vpack.c.b16 %v727, %v726
          %v751 = vpack.c.b16 %v729, %v728
          %v752 = vpack.c.b16 %v731, %v730
          %v753 = vpack.c.b16 %v733, %v732
          %v754 = vpack.c.b16 %v735, %v734
          %v755 = vpack.c.b16 %v737, %v736
          %v756 = vpack.c.b16 %v739, %v738
          %v757 = vpack.c.b16 %v741, %v740
          %v759 = vshrl.u32 %v742, 16
          %v761 = vrot.slane %v759, 7
          %v762 = vshll.u32 %v742, 16
          %v764 = vor.u32 %v761, %v762
          %v766 = vshrl.u32 %v743, 16
          %v768 = vrot.slane %v766, 7
          %v769 = vshll.u32 %v743, 16
          %v771 = vor.u32 %v768, %v769
          %v773 = vshrl.u32 %v744, 16
          %v775 = vrot.slane %v773, 7
          %v776 = vshll.u32 %v744, 16
          %v778 = vor.u32 %v775, %v776
          %v780 = vshrl.u32 %v745, 16
          %v782 = vrot.slane %v780, 7
          %v783 = vshll.u32 %v745, 16
          %v785 = vor.u32 %v782, %v783
          %v787 = vshrl.u32 %v746, 16
          %v789 = vrot.slane %v787, 7
          %v790 = vshll.u32 %v746, 16
          %v792 = vor.u32 %v789, %v790
          %v794 = vshrl.u32 %v747, 16
          %v796 = vrot.slane %v794, 7
          %v797 = vshll.u32 %v747, 16
          %v799 = vor.u32 %v796, %v797
          %v801 = vshrl.u32 %v748, 16
          %v803 = vrot.slane %v801, 7
          %v804 = vshll.u32 %v748, 16
          %v806 = vor.u32 %v803, %v804
          %v808 = vshrl.u32 %v749, 16
          %v810 = vrot.slane %v808, 7
          %v811 = vshll.u32 %v749, 16
          %v813 = vor.u32 %v810, %v811
          %v815 = vshrl.u32 %v750, 16
          %v817 = vrot.slane %v815, 7
          %v818 = vshll.u32 %v750, 16
          %v820 = vor.u32 %v817, %v818
          %v822 = vshrl.u32 %v751, 16
          %v824 = vrot.slane %v822, 7
          %v825 = vshll.u32 %v751, 16
          %v827 = vor.u32 %v824, %v825
          %v829 = vshrl.u32 %v752, 16
          %v831 = vrot.slane %v829, 7
          %v832 = vshll.u32 %v752, 16
          %v834 = vor.u32 %v831, %v832
          %v836 = vshrl.u32 %v753, 16
          %v838 = vrot.slane %v836, 7
          %v839 = vshll.u32 %v753, 16
          %v841 = vor.u32 %v838, %v839
          %v843 = vshrl.u32 %v754, 16
          %v845 = vrot.slane %v843, 7
          %v846 = vshll.u32 %v754, 16
          %v848 = vor.u32 %v845, %v846
          %v850 = vshrl.u32 %v755, 16
          %v852 = vrot.slane %v850, 7
          %v853 = vshll.u32 %v755, 16
          %v855 = vor.u32 %v852, %v853
          %v857 = vshrl.u32 %v756, 16
          %v859 = vrot.slane %v857, 7
          %v860 = vshll.u32 %v756, 16
          %v862 = vor.u32 %v859, %v860
          %v864 = vshrl.u32 %v757, 16
          %v866 = vrot.slane %v864, 7
          %v867 = vshll.u32 %v757, 16
          %v869 = vor.u32 %v866, %v867
          %vm902 = vcmask 1040384
          %vm903 = vsmask.f32 256
          %vm904 = vmand %vm902, %vm903
          %v905 = vsel %vm904, 0, %v764
          %v906 = vsel %vm904, 0, %v771
          %v907 = vsel %vm904, 0, %v778
          %v908 = vsel %vm904, 0, %v785
          %v909 = vsel %vm904, 0, %v792
          %v910 = vsel %vm904, 0, %v799
          %v911 = vsel %vm904, 0, %v806
          %v912 = vsel %vm904, 0, %v813
          %v913 = vsel %vm904, 0, %v820
          %v914 = vsel %vm904, 0, %v827
          %v915 = vsel %vm904, 0, %v834
          %v916 = vsel %vm904, 0, %v841
          %v917 = vsel %vm904, 0, %v848
          %v918 = vsel %vm904, 0, %v855
          %v919 = vsel %vm904, 0, %v862
          %v920 = vsel %vm904, 0, %v869
          %v921 = vsel %vm904, %v761, 0
          %v922 = vsel %vm904, %v768, 0
          %v923 = vsel %vm904, %v775, 0
          %v924 = vsel %vm904, %v782, 0
          %v925 = vsel %vm904, %v789, 0
          %v926 = vsel %vm904, %v796, 0
          %v927 = vsel %vm904, %v803, 0
          %v928 = vsel %vm904, %v810, 0
          %v929 = vsel %vm904, %v817, 0
          %v930 = vsel %vm904, %v824, 0
          %v931 = vsel %vm904, %v831, 0
          %v932 = vsel %vm904, %v838, 0
          %v933 = vsel %vm904, %v845, 0
          %v934 = vsel %vm904, %v852, 0
          %v935 = vsel %vm904, %v859, 0
          %v936 = vsel %vm904, %v866, 0
          %v969 = vunpack.c.l.b16 %v905
          %v970 = vunpack.c.h.b16 %v905
          %v971 = vunpack.c.l.b16 %v921
          %v972 = vunpack.c.l.b16 %v906
          %v973 = vunpack.c.h.b16 %v906
          %v974 = vunpack.c.l.b16 %v922
          %v975 = vunpack.c.l.b16 %v907
          %v976 = vunpack.c.h.b16 %v907
          %v977 = vunpack.c.l.b16 %v923
          %v978 = vunpack.c.l.b16 %v908
          %v979 = vunpack.c.h.b16 %v908
          %v980 = vunpack.c.l.b16 %v924
          %v981 = vunpack.c.l.b16 %v909
          %v982 = vunpack.c.h.b16 %v909
          %v983 = vunpack.c.l.b16 %v925
          %v984 = vunpack.c.l.b16 %v910
          %v985 = vunpack.c.h.b16 %v910
          %v986 = vunpack.c.l.b16 %v926
          %v987 = vunpack.c.l.b16 %v911
          %v988 = vunpack.c.h.b16 %v911
          %v989 = vunpack.c.l.b16 %v927
          %v990 = vunpack.c.l.b16 %v912
          %v991 = vunpack.c.h.b16 %v912
          %v992 = vunpack.c.l.b16 %v928
          %v993 = vunpack.c.l.b16 %v913
          %v994 = vunpack.c.h.b16 %v913
          %v995 = vunpack.c.l.b16 %v929
          %v996 = vunpack.c.l.b16 %v914
          %v997 = vunpack.c.h.b16 %v914
          %v998 = vunpack.c.l.b16 %v930
          %v999 = vunpack.c.l.b16 %v915
          %v1000 = vunpack.c.h.b16 %v915
          %v1001 = vunpack.c.l.b16 %v931
          %v1002 = vunpack.c.l.b16 %v916
          %v1003 = vunpack.c.h.b16 %v916
          %v1004 = vunpack.c.l.b16 %v932
          %v1005 = vunpack.c.l.b16 %v917
          %v1006 = vunpack.c.h.b16 %v917
          %v1007 = vunpack.c.l.b16 %v933
          %v1008 = vunpack.c.l.b16 %v918
          %v1009 = vunpack.c.h.b16 %v918
          %v1010 = vunpack.c.l.b16 %v934
          %v1011 = vunpack.c.l.b16 %v919
          %v1012 = vunpack.c.h.b16 %v919
          %v1013 = vunpack.c.l.b16 %v935
          %v1014 = vunpack.c.l.b16 %v920
          %v1015 = vunpack.c.h.b16 %v920
          %v1016 = vunpack.c.l.b16 %v936
          %v1017 = vpack.c.b16 %v969, %v969
          %v1018 = vpack.c.b16 %v970, %v970
          %v1019 = vpack.c.b16 %v971, %v971
          %v1020 = vpack.c.b16 %v972, %v972
          %v1021 = vpack.c.b16 %v973, %v973
          %v1022 = vpack.c.b16 %v974, %v974
          %v1023 = vpack.c.b16 %v975, %v975
          %v1024 = vpack.c.b16 %v976, %v976
          %v1025 = vpack.c.b16 %v977, %v977
          %v1026 = vpack.c.b16 %v978, %v978
          %v1027 = vpack.c.b16 %v979, %v979
          %v1028 = vpack.c.b16 %v980, %v980
          %v1029 = vpack.c.b16 %v981, %v981
          %v1030 = vpack.c.b16 %v982, %v982
          %v1031 = vpack.c.b16 %v983, %v983
          %v1032 = vpack.c.b16 %v984, %v984
          %v1033 = vpack.c.b16 %v985, %v985
          %v1034 = vpack.c.b16 %v986, %v986
          %v1035 = vpack.c.b16 %v987, %v987
          %v1036 = vpack.c.b16 %v988, %v988
          %v1037 = vpack.c.b16 %v989, %v989
          %v1038 = vpack.c.b16 %v990, %v990
          %v1039 = vpack.c.b16 %v991, %v991
          %v1040 = vpack.c.b16 %v992, %v992
          %v1041 = vpack.c.b16 %v993, %v993
          %v1042 = vpack.c.b16 %v994, %v994
          %v1043 = vpack.c.b16 %v995, %v995
          %v1044 = vpack.c.b16 %v996, %v996
          %v1045 = vpack.c.b16 %v997, %v997
          %v1046 = vpack.c.b16 %v998, %v998
          %v1047 = vpack.c.b16 %v999, %v999
          %v1048 = vpack.c.b16 %v1000, %v1000
          %v1049 = vpack.c.b16 %v1001, %v1001
          %v1050 = vpack.c.b16 %v1002, %v1002
          %v1051 = vpack.c.b16 %v1003, %v1003
          %v1052 = vpack.c.b16 %v1004, %v1004
          %v1053 = vpack.c.b16 %v1005, %v1005
          %v1054 = vpack.c.b16 %v1006, %v1006
          %v1055 = vpack.c.b16 %v1007, %v1007
          %v1056 = vpack.c.b16 %v1008, %v1008
          %v1057 = vpack.c.b16 %v1009, %v1009
          %v1058 = vpack.c.b16 %v1010, %v1010
          %v1059 = vpack.c.b16 %v1011, %v1011
          %v1060 = vpack.c.b16 %v1012, %v1012
          %v1061 = vpack.c.b16 %v1013, %v1013
          %v1062 = vpack.c.b16 %v1014, %v1014
          %v1063 = vpack.c.b16 %v1015, %v1015
          %v1064 = vpack.c.b16 %v1016, %v1016
          %s1113 = scalar_lea.vmem [#allocation2], 12
          %vm1114 = vcmask 60416
          %1115 = vst.msk [vmem:[%s1113] sm:$0xf] %vm1114, %v1017
          %1116 = vst.msk [vmem:[%s1113 + $0x4] sm:$0xf] %vm1114, %v1018
          %vm1117 = vcmask 57344
          %1118 = vst.msk [vmem:[%s1113 + $0x8] sm:$0x1] %vm1117, %v1019
          %1119 = vst.msk [vmem:[%s1113 + $0xc] sm:$0xf] %vm1114, %v1020
          %1120 = vst.msk [vmem:[%s1113 + $0x10] sm:$0xf] %vm1114, %v1021
          %1121 = vst.msk [vmem:[%s1113 + $0x14] sm:$0x1] %vm1117, %v1022
          %1122 = vst.msk [vmem:[%s1113 + $0x18] sm:$0xf] %vm1114, %v1023
          %1123 = vst.msk [vmem:[%s1113 + $0x1c] sm:$0xf] %vm1114, %v1024
          %1124 = vst.msk [vmem:[%s1113 + $0x20] sm:$0x1] %vm1117, %v1025
          %1125 = vst.msk [vmem:[%s1113 + $0x24] sm:$0xf] %vm1114, %v1026
          %1126 = vst.msk [vmem:[%s1113 + $0x28] sm:$0xf] %vm1114, %v1027
          %1127 = vst.msk [vmem:[%s1113 + $0x2c] sm:$0x1] %vm1117, %v1028
          %1128 = vst.msk [vmem:[%s1113 + $0x30] sm:$0xf] %vm1114, %v1029
          %1129 = vst.msk [vmem:[%s1113 + $0x34] sm:$0xf] %vm1114, %v1030
          %1130 = vst.msk [vmem:[%s1113 + $0x38] sm:$0x1] %vm1117, %v1031
          %1131 = vst.msk [vmem:[%s1113 + $0x3c] sm:$0xf] %vm1114, %v1032
          %1132 = vst.msk [vmem:[%s1113 + $0x40] sm:$0xf] %vm1114, %v1033
          %1133 = vst.msk [vmem:[%s1113 + $0x44] sm:$0x1] %vm1117, %v1034
          %1134 = vst.msk [vmem:[%s1113 + $0x48] sm:$0xf] %vm1114, %v1035
          %1135 = vst.msk [vmem:[%s1113 + $0x4c] sm:$0xf] %vm1114, %v1036
          %1136 = vst.msk [vmem:[%s1113 + $0x50] sm:$0x1] %vm1117, %v1037
          %1137 = vst.msk [vmem:[%s1113 + $0x54] sm:$0xf] %vm1114, %v1038
          %1138 = vst.msk [vmem:[%s1113 + $0x58] sm:$0xf] %vm1114, %v1039
          %1139 = vst.msk [vmem:[%s1113 + $0x5c] sm:$0x1] %vm1117, %v1040
          %1140 = vst.msk [vmem:[%s1113 + $0x60] sm:$0xf] %vm1114, %v1041
          %1141 = vst.msk [vmem:[%s1113 + $0x64] sm:$0xf] %vm1114, %v1042
          %1142 = vst.msk [vmem:[%s1113 + $0x68] sm:$0x1] %vm1117, %v1043
          %1143 = vst.msk [vmem:[%s1113 + $0x6c] sm:$0xf] %vm1114, %v1044
          %1144 = vst.msk [vmem:[%s1113 + $0x70] sm:$0xf] %vm1114, %v1045
          %1145 = vst.msk [vmem:[%s1113 + $0x74] sm:$0x1] %vm1117, %v1046
          %1146 = vst.msk [vmem:[%s1113 + $0x78] sm:$0xf] %vm1114, %v1047
          %1147 = vst.msk [vmem:[%s1113 + $0x7c] sm:$0xf] %vm1114, %v1048
          %1148 = vst.msk [vmem:[%s1113 + $0x80] sm:$0x1] %vm1117, %v1049
          %1149 = vst.msk [vmem:[%s1113 + $0x84] sm:$0xf] %vm1114, %v1050
          %1150 = vst.msk [vmem:[%s1113 + $0x88] sm:$0xf] %vm1114, %v1051
          %1151 = vst.msk [vmem:[%s1113 + $0x8c] sm:$0x1] %vm1117, %v1052
          %1152 = vst.msk [vmem:[%s1113 + $0x90] sm:$0xf] %vm1114, %v1053
          %1153 = vst.msk [vmem:[%s1113 + $0x94] sm:$0xf] %vm1114, %v1054
          %1154 = vst.msk [vmem:[%s1113 + $0x98] sm:$0x1] %vm1117, %v1055
          %1155 = vst.msk [vmem:[%s1113 + $0x9c] sm:$0xf] %vm1114, %v1056
          %1156 = vst.msk [vmem:[%s1113 + $0xa0] sm:$0xf] %vm1114, %v1057
          %1157 = vst.msk [vmem:[%s1113 + $0xa4] sm:$0x1] %vm1117, %v1058
          %1158 = vst.msk [vmem:[%s1113 + $0xa8] sm:$0xf] %vm1114, %v1059
          %1159 = vst.msk [vmem:[%s1113 + $0xac] sm:$0xf] %vm1114, %v1060
          %1160 = vst.msk [vmem:[%s1113 + $0xb0] sm:$0x1] %vm1117, %v1061
          %1161 = vst.msk [vmem:[%s1113 + $0xb4] sm:$0xf] %vm1114, %v1062
          %1162 = vst.msk [vmem:[%s1113 + $0xb8] sm:$0xf] %vm1114, %v1063
          %1163 = vst.msk [vmem:[%s1113 + $0xbc] sm:$0x1] %vm1117, %v1064
          %1164 = vst.msk [vmem:[#allocation2] sm:$0xf] %vm1114, 0
          %1165 = vst.msk [vmem:[#allocation2 + $0x4] sm:$0xf] %vm1114, 0
          %1166 = vst.msk [vmem:[#allocation2 + $0x8] sm:$0x1] %vm1117, 0
          %s1167 = scalar_lea.vmem [#allocation2], 204
          %1168 = vst.msk [vmem:[%s1167] sm:$0xf] %vm1114, 0
          %1169 = vst.msk [vmem:[%s1167 + $0x4] sm:$0xf] %vm1114, 0
          %1170 = vst.msk [vmem:[%s1167 + $0x8] sm:$0x1] %vm1117, 0
        $region60: #{bottleneck_forward.1} parent=55 // pred_fallthru
          _
        %s1171 = smul.u32 %s347, 3
        %s1172 = smul.addr %s1171, 4
        %s1173 = scalar_lea.vmem [#allocation2], %s1172
        %v1174 = vld [vmem:[%s1173] sm:$0xf]
        %v1175 = vld [vmem:[%s1173 + $0x4] sm:$0xf]
        %v1176 = vld [vmem:[%s1173 + $0x8] sm:$0x1]
        %v1177 = vld [vmem:[%s1173 + $0xc] sm:$0xf]
        %v1178 = vld [vmem:[%s1173 + $0x10] sm:$0xf]
        %v1179 = vld [vmem:[%s1173 + $0x14] sm:$0x1]
        %v1180 = vld [vmem:[%s1173 + $0x18] sm:$0xf]
        %v1181 = vld [vmem:[%s1173 + $0x1c] sm:$0xf]
        %v1182 = vld [vmem:[%s1173 + $0x20] sm:$0x1]
        %v1183 = vld [vmem:[%s1173 + $0x24] sm:$0xf]
        %v1184 = vld [vmem:[%s1173 + $0x28] sm:$0xf]
        %v1185 = vld [vmem:[%s1173 + $0x2c] sm:$0x1]
        %v1186 = vld [vmem:[%s1173 + $0x30] sm:$0xf]
        %v1187 = vld [vmem:[%s1173 + $0x34] sm:$0xf]
        %v1188 = vld [vmem:[%s1173 + $0x38] sm:$0x1]
        %v1189 = vld [vmem:[%s1173 + $0x3c] sm:$0xf]
        %v1190 = vld [vmem:[%s1173 + $0x40] sm:$0xf]
        %v1191 = vld [vmem:[%s1173 + $0x44] sm:$0x1]
        %v1192 = vld [vmem:[%s1173 + $0x48] sm:$0xf]
        %v1193 = vld [vmem:[%s1173 + $0x4c] sm:$0xf]
        %v1194 = vld [vmem:[%s1173 + $0x50] sm:$0x1]
        %v1195 = vld [vmem:[%s1173 + $0x54] sm:$0xf]
        %v1196 = vld [vmem:[%s1173 + $0x58] sm:$0xf]
        %v1197 = vld [vmem:[%s1173 + $0x5c] sm:$0x1]
        %v1214 = vunpack.c.l.b16 %v1174
        %v1215 = vunpack.c.l.b16 %v1175
        %v1216 = vunpack.c.l.b16 %v1177
        %v1217 = vunpack.c.l.b16 %v1178
        %v1218 = vunpack.c.l.b16 %v1180
        %v1219 = vunpack.c.l.b16 %v1181
        %v1220 = vunpack.c.l.b16 %v1183
        %v1221 = vunpack.c.l.b16 %v1184
        %v1222 = vunpack.c.l.b16 %v1186
        %v1223 = vunpack.c.l.b16 %v1187
        %v1224 = vunpack.c.l.b16 %v1189
        %v1225 = vunpack.c.l.b16 %v1190
        %v1226 = vunpack.c.l.b16 %v1192
        %v1227 = vunpack.c.l.b16 %v1193
        %v1228 = vunpack.c.l.b16 %v1195
        %v1229 = vunpack.c.l.b16 %v1196
        %v1230 = vpack.c.b16 %v1215, %v1214
        %v1231 = vpack.c.b16 %v1217, %v1216
        %v1232 = vpack.c.b16 %v1219, %v1218
        %v1233 = vpack.c.b16 %v1221, %v1220
        %v1234 = vpack.c.b16 %v1223, %v1222
        %v1235 = vpack.c.b16 %v1225, %v1224
        %v1236 = vpack.c.b16 %v1227, %v1226
        %v1237 = vpack.c.b16 %v1229, %v1228
        %v1246 = vunpack.c.l.b16 %v1176
        %v1247 = vunpack.c.l.b16 %v1179
        %v1248 = vunpack.c.l.b16 %v1182
        %v1249 = vunpack.c.l.b16 %v1185
        %v1250 = vunpack.c.l.b16 %v1188
        %v1251 = vunpack.c.l.b16 %v1191
        %v1252 = vunpack.c.l.b16 %v1194
        %v1253 = vunpack.c.l.b16 %v1197
        %v1254 = vpack.c.b16 %v1246, %v1246
        %v1255 = vpack.c.b16 %v1247, %v1247
        %v1256 = vpack.c.b16 %v1248, %v1248
        %v1257 = vpack.c.b16 %v1249, %v1249
        %v1258 = vpack.c.b16 %v1250, %v1250
        %v1259 = vpack.c.b16 %v1251, %v1251
        %v1260 = vpack.c.b16 %v1252, %v1252
        %v1261 = vpack.c.b16 %v1253, %v1253
        %vm1262 = vsmask.f32 7424
        %v1264 = vshrl.u32 %v1230, 16
        %v1266 = vshll.u32 %v1230, 16
        %v1268 = vrot.slane %v1266, 1
        %v1269 = vor.u32 %v1264, %v1268
        %v1271 = vshll.u32 %v1254, 16
        %v1273 = vrot.slane %v1271, 1
        %v1274 = vsel %vm1262, %v1269, %v1273
        %v1276 = vshrl.u32 %v1231, 16
        %v1278 = vshll.u32 %v1231, 16
        %v1280 = vrot.slane %v1278, 1
        %v1281 = vor.u32 %v1276, %v1280
        %v1283 = vshll.u32 %v1255, 16
        %v1285 = vrot.slane %v1283, 1
        %v1286 = vsel %vm1262, %v1281, %v1285
        %v1288 = vshrl.u32 %v1232, 16
        %v1290 = vshll.u32 %v1232, 16
        %v1292 = vrot.slane %v1290, 1
        %v1293 = vor.u32 %v1288, %v1292
        %v1295 = vshll.u32 %v1256, 16
        %v1297 = vrot.slane %v1295, 1
        %v1298 = vsel %vm1262, %v1293, %v1297
        %v1300 = vshrl.u32 %v1233, 16
        %v1302 = vshll.u32 %v1233, 16
        %v1304 = vrot.slane %v1302, 1
        %v1305 = vor.u32 %v1300, %v1304
        %v1307 = vshll.u32 %v1257, 16
        %v1309 = vrot.slane %v1307, 1
        %v1310 = vsel %vm1262, %v1305, %v1309
        %v1312 = vshrl.u32 %v1234, 16
        %v1314 = vshll.u32 %v1234, 16
        %v1316 = vrot.slane %v1314, 1
        %v1317 = vor.u32 %v1312, %v1316
        %v1319 = vshll.u32 %v1258, 16
        %v1321 = vrot.slane %v1319, 1
        %v1322 = vsel %vm1262, %v1317, %v1321
        %v1324 = vshrl.u32 %v1235, 16
        %v1326 = vshll.u32 %v1235, 16
        %v1328 = vrot.slane %v1326, 1
        %v1329 = vor.u32 %v1324, %v1328
        %v1331 = vshll.u32 %v1259, 16
        %v1333 = vrot.slane %v1331, 1
        %v1334 = vsel %vm1262, %v1329, %v1333
        %v1336 = vshrl.u32 %v1236, 16
        %v1338 = vshll.u32 %v1236, 16
        %v1340 = vrot.slane %v1338, 1
        %v1341 = vor.u32 %v1336, %v1340
        %v1343 = vshll.u32 %v1260, 16
        %v1345 = vrot.slane %v1343, 1
        %v1346 = vsel %vm1262, %v1341, %v1345
        %v1348 = vshrl.u32 %v1237, 16
        %v1350 = vshll.u32 %v1237, 16
        %v1352 = vrot.slane %v1350, 1
        %v1353 = vor.u32 %v1348, %v1352
        %v1355 = vshll.u32 %v1261, 16
        %v1357 = vrot.slane %v1355, 1
        %v1358 = vsel %vm1262, %v1353, %v1357
        %1359 = vrot.lane.b32.xlu0 %v1274, 8
        %v1360 = vpop.permute.xlu0 %1359
        %1361 = vrot.lane.b32.xlu0 %v1286, 8
        %v1362 = vpop.permute.xlu0 %1361
        %1363 = vrot.lane.b32.xlu0 %v1298, 8
        %v1364 = vpop.permute.xlu0 %1363
        %1365 = vrot.lane.b32.xlu0 %v1310, 8
        %v1366 = vpop.permute.xlu0 %1365
        %1367 = vrot.lane.b32.xlu0 %v1322, 8
        %v1368 = vpop.permute.xlu0 %1367
        %1369 = vrot.lane.b32.xlu0 %v1334, 8
        %v1370 = vpop.permute.xlu0 %1369
        %1371 = vrot.lane.b32.xlu0 %v1346, 8
        %v1372 = vpop.permute.xlu0 %1371
        %1373 = vrot.lane.b32.xlu0 %v1358, 8
        %v1374 = vpop.permute.xlu0 %1373
        %vm1375 = vcmask 1046528
        %v1376 = vrot.slane %v1230, 1
        %v1377 = vrot.slane %v1254, 1
        %v1378 = vsel %vm1375, %v1376, %v1377
        %v1379 = vrot.slane %v1231, 1
        %v1380 = vrot.slane %v1255, 1
        %v1381 = vsel %vm1375, %v1379, %v1380
        %v1382 = vrot.slane %v1232, 1
        %v1383 = vrot.slane %v1256, 1
        %v1384 = vsel %vm1375, %v1382, %v1383
        %v1385 = vrot.slane %v1233, 1
        %v1386 = vrot.slane %v1257, 1
        %v1387 = vsel %vm1375, %v1385, %v1386
        %v1388 = vrot.slane %v1234, 1
        %v1389 = vrot.slane %v1258, 1
        %v1390 = vsel %vm1375, %v1388, %v1389
        %v1391 = vrot.slane %v1235, 1
        %v1392 = vrot.slane %v1259, 1
        %v1393 = vsel %vm1375, %v1391, %v1392
        %v1394 = vrot.slane %v1236, 1
        %v1395 = vrot.slane %v1260, 1
        %v1396 = vsel %vm1375, %v1394, %v1395
        %v1397 = vrot.slane %v1237, 1
        %v1398 = vrot.slane %v1261, 1
        %v1399 = vsel %vm1375, %v1397, %v1398
        %1400 = vrot.lane.b32.xlu0 %v1378, 16
        %v1401 = vpop.permute.xlu0 %1400
        %1402 = vrot.lane.b32.xlu0 %v1381, 16
        %v1403 = vpop.permute.xlu0 %1402
        %1404 = vrot.lane.b32.xlu0 %v1384, 16
        %v1405 = vpop.permute.xlu0 %1404
        %1406 = vrot.lane.b32.xlu0 %v1387, 16
        %v1407 = vpop.permute.xlu0 %1406
        %1408 = vrot.lane.b32.xlu0 %v1390, 16
        %v1409 = vpop.permute.xlu0 %1408
        %1410 = vrot.lane.b32.xlu0 %v1393, 16
        %v1411 = vpop.permute.xlu0 %1410
        %1412 = vrot.lane.b32.xlu0 %v1396, 16
        %v1413 = vpop.permute.xlu0 %1412
        %1414 = vrot.lane.b32.xlu0 %v1399, 16
        %v1415 = vpop.permute.xlu0 %1414
        %vm1416 = vcmask 64512
        %v1418 = vsel %vm1416, %v1230, %v1360
        %v1420 = vsel %vm1416, %v1231, %v1362
        %v1422 = vsel %vm1416, %v1232, %v1364
        %v1424 = vsel %vm1416, %v1233, %v1366
        %v1426 = vsel %vm1416, %v1234, %v1368
        %v1428 = vsel %vm1416, %v1235, %v1370
        %v1430 = vsel %vm1416, %v1236, %v1372
        %v1432 = vsel %vm1416, %v1237, %v1374
        %vm1433 = vcmask 130048
        %v1435 = vsel %vm1433, %v1418, %v1401
        %v1437 = vsel %vm1433, %v1420, %v1403
        %v1439 = vsel %vm1433, %v1422, %v1405
        %v1441 = vsel %vm1433, %v1424, %v1407
        %v1443 = vsel %vm1433, %v1426, %v1409
        %v1445 = vsel %vm1433, %v1428, %v1411
        %v1447 = vsel %vm1433, %v1430, %v1413
        %v1449 = vsel %vm1433, %v1432, %v1415
        %v1450 = vld [vmem:[%s3] sm:$0xf]
        %v1451 = vld [vmem:[%s3 + $0x4] sm:$0xf]
        %v1452 = vld [vmem:[%s3 + $0x8] sm:$0xf]
        %s1453 = sadd.s32 %s347, 1
        %s1454 = smul.u32 %s1453, 3
        %s1455 = smul.addr %s1454, 4
        %s1456 = scalar_lea.vmem [#allocation2], %s1455
        %v1457 = vld [vmem:[%s1456] sm:$0xf]
        %v1458 = vld [vmem:[%s1456 + $0x4] sm:$0xf]
        %v1459 = vld [vmem:[%s1456 + $0x8] sm:$0x1]
        %v1460 = vld [vmem:[%s1456 + $0xc] sm:$0xf]
        %v1461 = vld [vmem:[%s1456 + $0x10] sm:$0xf]
        %v1462 = vld [vmem:[%s1456 + $0x14] sm:$0x1]
        %v1463 = vld [vmem:[%s1456 + $0x18] sm:$0xf]
        %v1464 = vld [vmem:[%s1456 + $0x1c] sm:$0xf]
        %v1465 = vld [vmem:[%s1456 + $0x20] sm:$0x1]
        %v1466 = vld [vmem:[%s1456 + $0x24] sm:$0xf]
        %v1467 = vld [vmem:[%s1456 + $0x28] sm:$0xf]
        %v1468 = vld [vmem:[%s1456 + $0x2c] sm:$0x1]
        %v1469 = vld [vmem:[%s1456 + $0x30] sm:$0xf]
        %v1470 = vld [vmem:[%s1456 + $0x34] sm:$0xf]
        %v1471 = vld [vmem:[%s1456 + $0x38] sm:$0x1]
        %v1472 = vld [vmem:[%s1456 + $0x3c] sm:$0xf]
        %v1473 = vld [vmem:[%s1456 + $0x40] sm:$0xf]
        %v1474 = vld [vmem:[%s1456 + $0x44] sm:$0x1]
        %v1475 = vld [vmem:[%s1456 + $0x48] sm:$0xf]
        %v1476 = vld [vmem:[%s1456 + $0x4c] sm:$0xf]
        %v1477 = vld [vmem:[%s1456 + $0x50] sm:$0x1]
        %v1478 = vld [vmem:[%s1456 + $0x54] sm:$0xf]
        %v1479 = vld [vmem:[%s1456 + $0x58] sm:$0xf]
        %v1480 = vld [vmem:[%s1456 + $0x5c] sm:$0x1]
        %v1497 = vunpack.c.l.b16 %v1457
        %v1498 = vunpack.c.l.b16 %v1458
        %v1499 = vunpack.c.l.b16 %v1460
        %v1500 = vunpack.c.l.b16 %v1461
        %v1501 = vunpack.c.l.b16 %v1463
        %v1502 = vunpack.c.l.b16 %v1464
        %v1503 = vunpack.c.l.b16 %v1466
        %v1504 = vunpack.c.l.b16 %v1467
        %v1505 = vunpack.c.l.b16 %v1469
        %v1506 = vunpack.c.l.b16 %v1470
        %v1507 = vunpack.c.l.b16 %v1472
        %v1508 = vunpack.c.l.b16 %v1473
        %v1509 = vunpack.c.l.b16 %v1475
        %v1510 = vunpack.c.l.b16 %v1476
        %v1511 = vunpack.c.l.b16 %v1478
        %v1512 = vunpack.c.l.b16 %v1479
        %v1513 = vpack.c.b16 %v1498, %v1497
        %v1514 = vpack.c.b16 %v1500, %v1499
        %v1515 = vpack.c.b16 %v1502, %v1501
        %v1516 = vpack.c.b16 %v1504, %v1503
        %v1517 = vpack.c.b16 %v1506, %v1505
        %v1518 = vpack.c.b16 %v1508, %v1507
        %v1519 = vpack.c.b16 %v1510, %v1509
        %v1520 = vpack.c.b16 %v1512, %v1511
        %v1529 = vunpack.c.l.b16 %v1459
        %v1530 = vunpack.c.l.b16 %v1462
        %v1531 = vunpack.c.l.b16 %v1465
        %v1532 = vunpack.c.l.b16 %v1468
        %v1533 = vunpack.c.l.b16 %v1471
        %v1534 = vunpack.c.l.b16 %v1474
        %v1535 = vunpack.c.l.b16 %v1477
        %v1536 = vunpack.c.l.b16 %v1480
        %v1537 = vpack.c.b16 %v1529, %v1529
        %v1538 = vpack.c.b16 %v1530, %v1530
        %v1539 = vpack.c.b16 %v1531, %v1531
        %v1540 = vpack.c.b16 %v1532, %v1532
        %v1541 = vpack.c.b16 %v1533, %v1533
        %v1542 = vpack.c.b16 %v1534, %v1534
        %v1543 = vpack.c.b16 %v1535, %v1535
        %v1544 = vpack.c.b16 %v1536, %v1536
        %v1546 = vshrl.u32 %v1513, 16
        %v1548 = vshll.u32 %v1513, 16
        %v1550 = vrot.slane %v1548, 1
        %v1551 = vor.u32 %v1546, %v1550
        %v1553 = vshll.u32 %v1537, 16
        %v1555 = vrot.slane %v1553, 1
        %v1556 = vsel %vm1262, %v1551, %v1555
        %v1558 = vshrl.u32 %v1514, 16
        %v1560 = vshll.u32 %v1514, 16
        %v1562 = vrot.slane %v1560, 1
        %v1563 = vor.u32 %v1558, %v1562
        %v1565 = vshll.u32 %v1538, 16
        %v1567 = vrot.slane %v1565, 1
        %v1568 = vsel %vm1262, %v1563, %v1567
        %v1570 = vshrl.u32 %v1515, 16
        %v1572 = vshll.u32 %v1515, 16
        %v1574 = vrot.slane %v1572, 1
        %v1575 = vor.u32 %v1570, %v1574
        %v1577 = vshll.u32 %v1539, 16
        %v1579 = vrot.slane %v1577, 1
        %v1580 = vsel %vm1262, %v1575, %v1579
        %v1582 = vshrl.u32 %v1516, 16
        %v1584 = vshll.u32 %v1516, 16
        %v1586 = vrot.slane %v1584, 1
        %v1587 = vor.u32 %v1582, %v1586
        %v1589 = vshll.u32 %v1540, 16
        %v1591 = vrot.slane %v1589, 1
        %v1592 = vsel %vm1262, %v1587, %v1591
        %v1594 = vshrl.u32 %v1517, 16
        %v1596 = vshll.u32 %v1517, 16
        %v1598 = vrot.slane %v1596, 1
        %v1599 = vor.u32 %v1594, %v1598
        %v1601 = vshll.u32 %v1541, 16
        %v1603 = vrot.slane %v1601, 1
        %v1604 = vsel %vm1262, %v1599, %v1603
        %v1606 = vshrl.u32 %v1518, 16
        %v1608 = vshll.u32 %v1518, 16
        %v1610 = vrot.slane %v1608, 1
        %v1611 = vor.u32 %v1606, %v1610
        %v1613 = vshll.u32 %v1542, 16
        %v1615 = vrot.slane %v1613, 1
        %v1616 = vsel %vm1262, %v1611, %v1615
        %v1618 = vshrl.u32 %v1519, 16
        %v1620 = vshll.u32 %v1519, 16
        %v1622 = vrot.slane %v1620, 1
        %v1623 = vor.u32 %v1618, %v1622
        %v1625 = vshll.u32 %v1543, 16
        %v1627 = vrot.slane %v1625, 1
        %v1628 = vsel %vm1262, %v1623, %v1627
        %v1630 = vshrl.u32 %v1520, 16
        %v1632 = vshll.u32 %v1520, 16
        %v1634 = vrot.slane %v1632, 1
        %v1635 = vor.u32 %v1630, %v1634
        %v1637 = vshll.u32 %v1544, 16
        %v1639 = vrot.slane %v1637, 1
        %v1640 = vsel %vm1262, %v1635, %v1639
        %1641 = vrot.lane.b32.xlu0 %v1556, 8
        %v1642 = vpop.permute.xlu0 %1641
        %1643 = vrot.lane.b32.xlu0 %v1568, 8
        %v1644 = vpop.permute.xlu0 %1643
        %1645 = vrot.lane.b32.xlu0 %v1580, 8
        %v1646 = vpop.permute.xlu0 %1645
        %1647 = vrot.lane.b32.xlu0 %v1592, 8
        %v1648 = vpop.permute.xlu0 %1647
        %1649 = vrot.lane.b32.xlu0 %v1604, 8
        %v1650 = vpop.permute.xlu0 %1649
        %1651 = vrot.lane.b32.xlu0 %v1616, 8
        %v1652 = vpop.permute.xlu0 %1651
        %1653 = vrot.lane.b32.xlu0 %v1628, 8
        %v1654 = vpop.permute.xlu0 %1653
        %1655 = vrot.lane.b32.xlu0 %v1640, 8
        %v1656 = vpop.permute.xlu0 %1655
        %v1657 = vrot.slane %v1513, 1
        %v1658 = vrot.slane %v1537, 1
        %v1659 = vsel %vm1375, %v1657, %v1658
        %v1660 = vrot.slane %v1514, 1
        %v1661 = vrot.slane %v1538, 1
        %v1662 = vsel %vm1375, %v1660, %v1661
        %v1663 = vrot.slane %v1515, 1
        %v1664 = vrot.slane %v1539, 1
        %v1665 = vsel %vm1375, %v1663, %v1664
        %v1666 = vrot.slane %v1516, 1
        %v1667 = vrot.slane %v1540, 1
        %v1668 = vsel %vm1375, %v1666, %v1667
        %v1669 = vrot.slane %v1517, 1
        %v1670 = vrot.slane %v1541, 1
        %v1671 = vsel %vm1375, %v1669, %v1670
        %v1672 = vrot.slane %v1518, 1
        %v1673 = vrot.slane %v1542, 1
        %v1674 = vsel %vm1375, %v1672, %v1673
        %v1675 = vrot.slane %v1519, 1
        %v1676 = vrot.slane %v1543, 1
        %v1677 = vsel %vm1375, %v1675, %v1676
        %v1678 = vrot.slane %v1520, 1
        %v1679 = vrot.slane %v1544, 1
        %v1680 = vsel %vm1375, %v1678, %v1679
        %1681 = vrot.lane.b32.xlu0 %v1659, 16
        %v1682 = vpop.permute.xlu0 %1681
        %1683 = vrot.lane.b32.xlu0 %v1662, 16
        %v1684 = vpop.permute.xlu0 %1683
        %1685 = vrot.lane.b32.xlu0 %v1665, 16
        %v1686 = vpop.permute.xlu0 %1685
        %1687 = vrot.lane.b32.xlu0 %v1668, 16
        %v1688 = vpop.permute.xlu0 %1687
        %1689 = vrot.lane.b32.xlu0 %v1671, 16
        %v1690 = vpop.permute.xlu0 %1689
        %1691 = vrot.lane.b32.xlu0 %v1674, 16
        %v1692 = vpop.permute.xlu0 %1691
        %1693 = vrot.lane.b32.xlu0 %v1677, 16
        %v1694 = vpop.permute.xlu0 %1693
        %1695 = vrot.lane.b32.xlu0 %v1680, 16
        %v1696 = vpop.permute.xlu0 %1695
        %v1698 = vsel %vm1416, %v1513, %v1642
        %v1700 = vsel %vm1416, %v1514, %v1644
        %v1702 = vsel %vm1416, %v1515, %v1646
        %v1704 = vsel %vm1416, %v1516, %v1648
        %v1706 = vsel %vm1416, %v1517, %v1650
        %v1708 = vsel %vm1416, %v1518, %v1652
        %v1710 = vsel %vm1416, %v1519, %v1654
        %v1712 = vsel %vm1416, %v1520, %v1656
        %v1714 = vsel %vm1433, %v1698, %v1682
        %v1716 = vsel %vm1433, %v1700, %v1684
        %v1718 = vsel %vm1433, %v1702, %v1686
        %v1720 = vsel %vm1433, %v1704, %v1688
        %v1722 = vsel %vm1433, %v1706, %v1690
        %v1724 = vsel %vm1433, %v1708, %v1692
        %v1726 = vsel %vm1433, %v1710, %v1694
        %v1728 = vsel %vm1433, %v1712, %v1696
        %s1729 = scalar_lea.vmem %s3, 12
        %v1730 = vld [vmem:[%s1729] sm:$0xf]
        %v1731 = vld [vmem:[%s1729 + $0x4] sm:$0xf]
        %v1732 = vld [vmem:[%s1729 + $0x8] sm:$0xf]
        %v1736 = vunpack.c.l.b16 %v1730
        %v1737 = vunpack.c.l.b16 %v1731
        %v1738 = vunpack.c.l.b16 %v1732
        %v1739 = vpack.c.b16 %v1737, %v1736
        %v1740 = vpack.c.b16 %v1738, %v1738
        %vm1742 = vcmask 195584
        %v1743 = vsel %vm1742, %v1714, 0
        %v1745 = vsel %vm1742, %v1716, 0
        %v1747 = vsel %vm1742, %v1718, 0
        %v1749 = vsel %vm1742, %v1720, 0
        %v1751 = vsel %vm1742, %v1722, 0
        %v1753 = vsel %vm1742, %v1724, 0
        %v1755 = vsel %vm1742, %v1726, 0
        %v1757 = vsel %vm1742, %v1728, 0
        %vm1759 = vcmask 1043456
        %v1761 = vsel %vm1759, %v1740, 0
        %1763 = vmatpush.bf16.msra.mxu0 0
        %1764 = vmatpush.bf16.msra.mxu0 0
        %1765 = vmatpush.bf16.msra.mxu0 0
        %1766 = vmatpush.bf16.msra.mxu0 0
        %1767 = vmatpush.bf16.msra.mxu0 0
        %1768 = vmatpush.bf16.msra.mxu0 0
        %1769 = vmatpush.bf16.msra.mxu0 %v1761
        %1770 = vmatpush.bf16.msra.mxu0 %v1739
        %1771 = vmatmul.bf16.gmra.mxu0 %v1743
        %v1772 = vpop.f32.mrf.mxu0
        %v1773 = vadd.f32 0.0, %v1772
        %v1774 = vpop.f32.mrf.mxu0
        %v1775 = vadd.f32 0.0, %v1774
        %1776 = vmatmul.bf16.gmra.mxu0 %v1745
        %v1777 = vpop.f32.mrf.mxu0
        %v1778 = vadd.f32 0.0, %v1777
        %v1779 = vpop.f32.mrf.mxu0
        %v1780 = vadd.f32 0.0, %v1779
        %1781 = vmatmul.bf16.gmra.mxu0 %v1747
        %v1782 = vpop.f32.mrf.mxu0
        %v1783 = vadd.f32 0.0, %v1782
        %v1784 = vpop.f32.mrf.mxu0
        %v1785 = vadd.f32 0.0, %v1784
        %1786 = vmatmul.bf16.gmra.mxu0 %v1749
        %v1787 = vpop.f32.mrf.mxu0
        %v1788 = vadd.f32 0.0, %v1787
        %v1789 = vpop.f32.mrf.mxu0
        %v1790 = vadd.f32 0.0, %v1789
        %1791 = vmatmul.bf16.gmra.mxu0 %v1751
        %v1792 = vpop.f32.mrf.mxu0
        %v1793 = vadd.f32 0.0, %v1792
        %v1794 = vpop.f32.mrf.mxu0
        %v1795 = vadd.f32 0.0, %v1794
        %1796 = vmatmul.bf16.gmra.mxu0 %v1753
        %v1797 = vpop.f32.mrf.mxu0
        %v1798 = vadd.f32 0.0, %v1797
        %v1799 = vpop.f32.mrf.mxu0
        %v1800 = vadd.f32 0.0, %v1799
        %1801 = vmatmul.bf16.gmra.mxu0 %v1755
        %v1802 = vpop.f32.mrf.mxu0
        %v1803 = vadd.f32 0.0, %v1802
        %v1804 = vpop.f32.mrf.mxu0
        %v1805 = vadd.f32 0.0, %v1804
        %1806 = vmatmul.bf16.gmra.mxu0 %v1757
        %v1807 = vpop.f32.mrf.mxu0
        %v1808 = vadd.f32 0.0, %v1807
        %v1809 = vpop.f32.mrf.mxu0
        %v1810 = vadd.f32 0.0, %v1809
        %1811 = vdwg.mxu0
        %v1815 = vunpack.c.l.b16 %v1450
        %v1816 = vunpack.c.l.b16 %v1451
        %v1817 = vunpack.c.l.b16 %v1452
        %v1818 = vpack.c.b16 %v1816, %v1815
        %v1819 = vpack.c.b16 %v1817, %v1817
        %v1821 = vsel %vm1742, %v1435, 0
        %v1823 = vsel %vm1742, %v1437, 0
        %v1825 = vsel %vm1742, %v1439, 0
        %v1827 = vsel %vm1742, %v1441, 0
        %v1829 = vsel %vm1742, %v1443, 0
        %v1831 = vsel %vm1742, %v1445, 0
        %v1833 = vsel %vm1742, %v1447, 0
        %v1835 = vsel %vm1742, %v1449, 0
        %v1838 = vsel %vm1759, %v1819, 0
        %1840 = vmatpush.bf16.msra.mxu0 0
        %1841 = vmatpush.bf16.msra.mxu0 0
        %1842 = vmatpush.bf16.msra.mxu0 0
        %1843 = vmatpush.bf16.msra.mxu0 0
        %1844 = vmatpush.bf16.msra.mxu0 0
        %1845 = vmatpush.bf16.msra.mxu0 0
        %1846 = vmatpush.bf16.msra.mxu0 %v1838
        %1847 = vmatpush.bf16.msra.mxu0 %v1818
        %1848 = vmatmul.bf16.gmra.mxu0 %v1821
        %v1849 = vpop.f32.mrf.mxu0
        %v1850 = vadd.f32 %v1773, %v1849
        %v1851 = vpop.f32.mrf.mxu0
        %v1852 = vadd.f32 %v1775, %v1851
        %1853 = vmatmul.bf16.gmra.mxu0 %v1823
        %v1854 = vpop.f32.mrf.mxu0
        %v1855 = vadd.f32 %v1778, %v1854
        %v1856 = vpop.f32.mrf.mxu0
        %v1857 = vadd.f32 %v1780, %v1856
        %1858 = vmatmul.bf16.gmra.mxu0 %v1825
        %v1859 = vpop.f32.mrf.mxu0
        %v1860 = vadd.f32 %v1783, %v1859
        %v1861 = vpop.f32.mrf.mxu0
        %v1862 = vadd.f32 %v1785, %v1861
        %1863 = vmatmul.bf16.gmra.mxu0 %v1827
        %v1864 = vpop.f32.mrf.mxu0
        %v1865 = vadd.f32 %v1788, %v1864
        %v1866 = vpop.f32.mrf.mxu0
        %v1867 = vadd.f32 %v1790, %v1866
        %1868 = vmatmul.bf16.gmra.mxu0 %v1829
        %v1869 = vpop.f32.mrf.mxu0
        %v1870 = vadd.f32 %v1793, %v1869
        %v1871 = vpop.f32.mrf.mxu0
        %v1872 = vadd.f32 %v1795, %v1871
        %1873 = vmatmul.bf16.gmra.mxu0 %v1831
        %v1874 = vpop.f32.mrf.mxu0
        %v1875 = vadd.f32 %v1798, %v1874
        %v1876 = vpop.f32.mrf.mxu0
        %v1877 = vadd.f32 %v1800, %v1876
        %1878 = vmatmul.bf16.gmra.mxu0 %v1833
        %v1879 = vpop.f32.mrf.mxu0
        %v1880 = vadd.f32 %v1803, %v1879
        %v1881 = vpop.f32.mrf.mxu0
        %v1882 = vadd.f32 %v1805, %v1881
        %1883 = vmatmul.bf16.gmra.mxu0 %v1835
        %v1884 = vpop.f32.mrf.mxu0
        %v1885 = vadd.f32 %v1808, %v1884
        %v1886 = vpop.f32.mrf.mxu0
        %v1887 = vadd.f32 %v1810, %v1886
        %1888 = vdwg.mxu0
        %s1889 = sadd.s32 %s347, 2
        %s1890 = smul.u32 %s1889, 3
        %s1891 = smul.addr %s1890, 4
        %s1892 = scalar_lea.vmem [#allocation2], %s1891
        %v1893 = vld [vmem:[%s1892] sm:$0xf]
        %v1894 = vld [vmem:[%s1892 + $0x4] sm:$0xf]
        %v1895 = vld [vmem:[%s1892 + $0x8] sm:$0x1]
        %v1896 = vld [vmem:[%s1892 + $0xc] sm:$0xf]
        %v1897 = vld [vmem:[%s1892 + $0x10] sm:$0xf]
        %v1898 = vld [vmem:[%s1892 + $0x14] sm:$0x1]
        %v1899 = vld [vmem:[%s1892 + $0x18] sm:$0xf]
        %v1900 = vld [vmem:[%s1892 + $0x1c] sm:$0xf]
        %v1901 = vld [vmem:[%s1892 + $0x20] sm:$0x1]
        %v1902 = vld [vmem:[%s1892 + $0x24] sm:$0xf]
        %v1903 = vld [vmem:[%s1892 + $0x28] sm:$0xf]
        %v1904 = vld [vmem:[%s1892 + $0x2c] sm:$0x1]
        %v1905 = vld [vmem:[%s1892 + $0x30] sm:$0xf]
        %v1906 = vld [vmem:[%s1892 + $0x34] sm:$0xf]
        %v1907 = vld [vmem:[%s1892 + $0x38] sm:$0x1]
        %v1908 = vld [vmem:[%s1892 + $0x3c] sm:$0xf]
        %v1909 = vld [vmem:[%s1892 + $0x40] sm:$0xf]
        %v1910 = vld [vmem:[%s1892 + $0x44] sm:$0x1]
        %v1911 = vld [vmem:[%s1892 + $0x48] sm:$0xf]
        %v1912 = vld [vmem:[%s1892 + $0x4c] sm:$0xf]
        %v1913 = vld [vmem:[%s1892 + $0x50] sm:$0x1]
        %v1914 = vld [vmem:[%s1892 + $0x54] sm:$0xf]
        %v1915 = vld [vmem:[%s1892 + $0x58] sm:$0xf]
        %v1916 = vld [vmem:[%s1892 + $0x5c] sm:$0x1]
        %v1933 = vunpack.c.l.b16 %v1893
        %v1934 = vunpack.c.l.b16 %v1894
        %v1935 = vunpack.c.l.b16 %v1896
        %v1936 = vunpack.c.l.b16 %v1897
        %v1937 = vunpack.c.l.b16 %v1899
        %v1938 = vunpack.c.l.b16 %v1900
        %v1939 = vunpack.c.l.b16 %v1902
        %v1940 = vunpack.c.l.b16 %v1903
        %v1941 = vunpack.c.l.b16 %v1905
        %v1942 = vunpack.c.l.b16 %v1906
        %v1943 = vunpack.c.l.b16 %v1908
        %v1944 = vunpack.c.l.b16 %v1909
        %v1945 = vunpack.c.l.b16 %v1911
        %v1946 = vunpack.c.l.b16 %v1912
        %v1947 = vunpack.c.l.b16 %v1914
        %v1948 = vunpack.c.l.b16 %v1915
        %v1949 = vpack.c.b16 %v1934, %v1933
        %v1950 = vpack.c.b16 %v1936, %v1935
        %v1951 = vpack.c.b16 %v1938, %v1937
        %v1952 = vpack.c.b16 %v1940, %v1939
        %v1953 = vpack.c.b16 %v1942, %v1941
        %v1954 = vpack.c.b16 %v1944, %v1943
        %v1955 = vpack.c.b16 %v1946, %v1945
        %v1956 = vpack.c.b16 %v1948, %v1947
        %v1965 = vunpack.c.l.b16 %v1895
        %v1966 = vunpack.c.l.b16 %v1898
        %v1967 = vunpack.c.l.b16 %v1901
        %v1968 = vunpack.c.l.b16 %v1904
        %v1969 = vunpack.c.l.b16 %v1907
        %v1970 = vunpack.c.l.b16 %v1910
        %v1971 = vunpack.c.l.b16 %v1913
        %v1972 = vunpack.c.l.b16 %v1916
        %v1973 = vpack.c.b16 %v1965, %v1965
        %v1974 = vpack.c.b16 %v1966, %v1966
        %v1975 = vpack.c.b16 %v1967, %v1967
        %v1976 = vpack.c.b16 %v1968, %v1968
        %v1977 = vpack.c.b16 %v1969, %v1969
        %v1978 = vpack.c.b16 %v1970, %v1970
        %v1979 = vpack.c.b16 %v1971, %v1971
        %v1980 = vpack.c.b16 %v1972, %v1972
        %v1982 = vshrl.u32 %v1949, 16
        %v1984 = vshll.u32 %v1949, 16
        %v1986 = vrot.slane %v1984, 1
        %v1987 = vor.u32 %v1982, %v1986
        %v1989 = vshll.u32 %v1973, 16
        %v1991 = vrot.slane %v1989, 1
        %v1992 = vsel %vm1262, %v1987, %v1991
        %v1994 = vshrl.u32 %v1950, 16
        %v1996 = vshll.u32 %v1950, 16
        %v1998 = vrot.slane %v1996, 1
        %v1999 = vor.u32 %v1994, %v1998
        %v2001 = vshll.u32 %v1974, 16
        %v2003 = vrot.slane %v2001, 1
        %v2004 = vsel %vm1262, %v1999, %v2003
        %v2006 = vshrl.u32 %v1951, 16
        %v2008 = vshll.u32 %v1951, 16
        %v2010 = vrot.slane %v2008, 1
        %v2011 = vor.u32 %v2006, %v2010
        %v2013 = vshll.u32 %v1975, 16
        %v2015 = vrot.slane %v2013, 1
        %v2016 = vsel %vm1262, %v2011, %v2015
        %v2018 = vshrl.u32 %v1952, 16
        %v2020 = vshll.u32 %v1952, 16
        %v2022 = vrot.slane %v2020, 1
        %v2023 = vor.u32 %v2018, %v2022
        %v2025 = vshll.u32 %v1976, 16
        %v2027 = vrot.slane %v2025, 1
        %v2028 = vsel %vm1262, %v2023, %v2027
        %v2030 = vshrl.u32 %v1953, 16
        %v2032 = vshll.u32 %v1953, 16
        %v2034 = vrot.slane %v2032, 1
        %v2035 = vor.u32 %v2030, %v2034
        %v2037 = vshll.u32 %v1977, 16
        %v2039 = vrot.slane %v2037, 1
        %v2040 = vsel %vm1262, %v2035, %v2039
        %v2042 = vshrl.u32 %v1954, 16
        %v2044 = vshll.u32 %v1954, 16
        %v2046 = vrot.slane %v2044, 1
        %v2047 = vor.u32 %v2042, %v2046
        %v2049 = vshll.u32 %v1978, 16
        %v2051 = vrot.slane %v2049, 1
        %v2052 = vsel %vm1262, %v2047, %v2051
        %v2054 = vshrl.u32 %v1955, 16
        %v2056 = vshll.u32 %v1955, 16
        %v2058 = vrot.slane %v2056, 1
        %v2059 = vor.u32 %v2054, %v2058
        %v2061 = vshll.u32 %v1979, 16
        %v2063 = vrot.slane %v2061, 1
        %v2064 = vsel %vm1262, %v2059, %v2063
        %v2066 = vshrl.u32 %v1956, 16
        %v2068 = vshll.u32 %v1956, 16
        %v2070 = vrot.slane %v2068, 1
        %v2071 = vor.u32 %v2066, %v2070
        %v2073 = vshll.u32 %v1980, 16
        %v2075 = vrot.slane %v2073, 1
        %v2076 = vsel %vm1262, %v2071, %v2075
        %2077 = vrot.lane.b32.xlu0 %v1992, 8
        %v2078 = vpop.permute.xlu0 %2077
        %2079 = vrot.lane.b32.xlu0 %v2004, 8
        %v2080 = vpop.permute.xlu0 %2079
        %2081 = vrot.lane.b32.xlu0 %v2016, 8
        %v2082 = vpop.permute.xlu0 %2081
        %2083 = vrot.lane.b32.xlu0 %v2028, 8
        %v2084 = vpop.permute.xlu0 %2083
        %2085 = vrot.lane.b32.xlu0 %v2040, 8
        %v2086 = vpop.permute.xlu0 %2085
        %2087 = vrot.lane.b32.xlu0 %v2052, 8
        %v2088 = vpop.permute.xlu0 %2087
        %2089 = vrot.lane.b32.xlu0 %v2064, 8
        %v2090 = vpop.permute.xlu0 %2089
        %2091 = vrot.lane.b32.xlu0 %v2076, 8
        %v2092 = vpop.permute.xlu0 %2091
        %v2093 = vrot.slane %v1949, 1
        %v2094 = vrot.slane %v1973, 1
        %v2095 = vsel %vm1375, %v2093, %v2094
        %v2096 = vrot.slane %v1950, 1
        %v2097 = vrot.slane %v1974, 1
        %v2098 = vsel %vm1375, %v2096, %v2097
        %v2099 = vrot.slane %v1951, 1
        %v2100 = vrot.slane %v1975, 1
        %v2101 = vsel %vm1375, %v2099, %v2100
        %v2102 = vrot.slane %v1952, 1
        %v2103 = vrot.slane %v1976, 1
        %v2104 = vsel %vm1375, %v2102, %v2103
        %v2105 = vrot.slane %v1953, 1
        %v2106 = vrot.slane %v1977, 1
        %v2107 = vsel %vm1375, %v2105, %v2106
        %v2108 = vrot.slane %v1954, 1
        %v2109 = vrot.slane %v1978, 1
        %v2110 = vsel %vm1375, %v2108, %v2109
        %v2111 = vrot.slane %v1955, 1
        %v2112 = vrot.slane %v1979, 1
        %v2113 = vsel %vm1375, %v2111, %v2112
        %v2114 = vrot.slane %v1956, 1
        %v2115 = vrot.slane %v1980, 1
        %v2116 = vsel %vm1375, %v2114, %v2115
        %2117 = vrot.lane.b32.xlu0 %v2095, 16
        %v2118 = vpop.permute.xlu0 %2117
        %2119 = vrot.lane.b32.xlu0 %v2098, 16
        %v2120 = vpop.permute.xlu0 %2119
        %2121 = vrot.lane.b32.xlu0 %v2101, 16
        %v2122 = vpop.permute.xlu0 %2121
        %2123 = vrot.lane.b32.xlu0 %v2104, 16
        %v2124 = vpop.permute.xlu0 %2123
        %2125 = vrot.lane.b32.xlu0 %v2107, 16
        %v2126 = vpop.permute.xlu0 %2125
        %2127 = vrot.lane.b32.xlu0 %v2110, 16
        %v2128 = vpop.permute.xlu0 %2127
        %2129 = vrot.lane.b32.xlu0 %v2113, 16
        %v2130 = vpop.permute.xlu0 %2129
        %2131 = vrot.lane.b32.xlu0 %v2116, 16
        %v2132 = vpop.permute.xlu0 %2131
        %v2134 = vsel %vm1416, %v1949, %v2078
        %v2136 = vsel %vm1416, %v1950, %v2080
        %v2138 = vsel %vm1416, %v1951, %v2082
        %v2140 = vsel %vm1416, %v1952, %v2084
        %v2142 = vsel %vm1416, %v1953, %v2086
        %v2144 = vsel %vm1416, %v1954, %v2088
        %v2146 = vsel %vm1416, %v1955, %v2090
        %v2148 = vsel %vm1416, %v1956, %v2092
        %v2150 = vsel %vm1433, %v2134, %v2118
        %v2152 = vsel %vm1433, %v2136, %v2120
        %v2154 = vsel %vm1433, %v2138, %v2122
        %v2156 = vsel %vm1433, %v2140, %v2124
        %v2158 = vsel %vm1433, %v2142, %v2126
        %v2160 = vsel %vm1433, %v2144, %v2128
        %v2162 = vsel %vm1433, %v2146, %v2130
        %v2164 = vsel %vm1433, %v2148, %v2132
        %s2165 = scalar_lea.vmem %s3, 24
        %v2166 = vld [vmem:[%s2165] sm:$0xf]
        %v2167 = vld [vmem:[%s2165 + $0x4] sm:$0xf]
        %v2168 = vld [vmem:[%s2165 + $0x8] sm:$0xf]
        %v2172 = vunpack.c.l.b16 %v2166
        %v2173 = vunpack.c.l.b16 %v2167
        %v2174 = vunpack.c.l.b16 %v2168
        %v2175 = vpack.c.b16 %v2173, %v2172
        %v2176 = vpack.c.b16 %v2174, %v2174
        %v2178 = vsel %vm1742, %v2150, 0
        %v2180 = vsel %vm1742, %v2152, 0
        %v2182 = vsel %vm1742, %v2154, 0
        %v2184 = vsel %vm1742, %v2156, 0
        %v2186 = vsel %vm1742, %v2158, 0
        %v2188 = vsel %vm1742, %v2160, 0
        %v2190 = vsel %vm1742, %v2162, 0
        %v2192 = vsel %vm1742, %v2164, 0
        %v2195 = vsel %vm1759, %v2176, 0
        %2197 = vmatpush.bf16.msra.mxu0 0
        %2198 = vmatpush.bf16.msra.mxu0 0
        %2199 = vmatpush.bf16.msra.mxu0 0
        %2200 = vmatpush.bf16.msra.mxu0 0
        %2201 = vmatpush.bf16.msra.mxu0 0
        %2202 = vmatpush.bf16.msra.mxu0 0
        %2203 = vmatpush.bf16.msra.mxu0 %v2195
        %2204 = vmatpush.bf16.msra.mxu0 %v2175
        %2205 = vmatmul.bf16.gmra.mxu0 %v2178
        %v2206 = vpop.f32.mrf.mxu0
        %v2207 = vadd.f32 0.0, %v2206
        %v2208 = vpop.f32.mrf.mxu0
        %v2209 = vadd.f32 0.0, %v2208
        %2210 = vmatmul.bf16.gmra.mxu0 %v2180
        %v2211 = vpop.f32.mrf.mxu0
        %v2212 = vadd.f32 0.0, %v2211
        %v2213 = vpop.f32.mrf.mxu0
        %v2214 = vadd.f32 0.0, %v2213
        %2215 = vmatmul.bf16.gmra.mxu0 %v2182
        %v2216 = vpop.f32.mrf.mxu0
        %v2217 = vadd.f32 0.0, %v2216
        %v2218 = vpop.f32.mrf.mxu0
        %v2219 = vadd.f32 0.0, %v2218
        %2220 = vmatmul.bf16.gmra.mxu0 %v2184
        %v2221 = vpop.f32.mrf.mxu0
        %v2222 = vadd.f32 0.0, %v2221
        %v2223 = vpop.f32.mrf.mxu0
        %v2224 = vadd.f32 0.0, %v2223
        %2225 = vmatmul.bf16.gmra.mxu0 %v2186
        %v2226 = vpop.f32.mrf.mxu0
        %v2227 = vadd.f32 0.0, %v2226
        %v2228 = vpop.f32.mrf.mxu0
        %v2229 = vadd.f32 0.0, %v2228
        %2230 = vmatmul.bf16.gmra.mxu0 %v2188
        %v2231 = vpop.f32.mrf.mxu0
        %v2232 = vadd.f32 0.0, %v2231
        %v2233 = vpop.f32.mrf.mxu0
        %v2234 = vadd.f32 0.0, %v2233
        %2235 = vmatmul.bf16.gmra.mxu0 %v2190
        %v2236 = vpop.f32.mrf.mxu0
        %v2237 = vadd.f32 0.0, %v2236
        %v2238 = vpop.f32.mrf.mxu0
        %v2239 = vadd.f32 0.0, %v2238
        %2240 = vmatmul.bf16.gmra.mxu0 %v2192
        %v2241 = vpop.f32.mrf.mxu0
        %v2242 = vadd.f32 0.0, %v2241
        %v2243 = vpop.f32.mrf.mxu0
        %v2244 = vadd.f32 0.0, %v2243
        %2245 = vdwg.mxu0
        %v2246 = vadd.f32 %v1850, %v2207
        %v2247 = vadd.f32 %v1852, %v2209
        %v2248 = vadd.f32 %v1855, %v2212
        %v2249 = vadd.f32 %v1857, %v2214
        %v2250 = vadd.f32 %v1860, %v2217
        %v2251 = vadd.f32 %v1862, %v2219
        %v2252 = vadd.f32 %v1865, %v2222
        %v2253 = vadd.f32 %v1867, %v2224
        %v2254 = vadd.f32 %v1870, %v2227
        %v2255 = vadd.f32 %v1872, %v2229
        %v2256 = vadd.f32 %v1875, %v2232
        %v2257 = vadd.f32 %v1877, %v2234
        %v2258 = vadd.f32 %v1880, %v2237
        %v2259 = vadd.f32 %v1882, %v2239
        %v2260 = vadd.f32 %v1885, %v2242
        %v2261 = vadd.f32 %v1887, %v2244
        %v2262 = vld [vmem:[%s4] sm:$0x1]
        %v2264 = vperm.slane %v2262, 0
        %v2266 = vadd.f32 %v2246, %v2264
        %v2267 = vadd.f32 %v2247, %v2264
        %v2268 = vadd.f32 %v2248, %v2264
        %v2269 = vadd.f32 %v2249, %v2264
        %v2270 = vadd.f32 %v2250, %v2264
        %v2271 = vadd.f32 %v2251, %v2264
        %v2272 = vadd.f32 %v2252, %v2264
        %v2273 = vadd.f32 %v2253, %v2264
        %v2274 = vadd.f32 %v2254, %v2264
        %v2275 = vadd.f32 %v2255, %v2264
        %v2276 = vadd.f32 %v2256, %v2264
        %v2277 = vadd.f32 %v2257, %v2264
        %v2278 = vadd.f32 %v2258, %v2264
        %v2279 = vadd.f32 %v2259, %v2264
        %v2280 = vadd.f32 %v2260, %v2264
        %v2281 = vadd.f32 %v2261, %v2264
        %v2282 = vmax.f32 %v2266, 0.0
        %v2283 = vmax.f32 %v2267, 0.0
        %v2284 = vmax.f32 %v2268, 0.0
        %v2285 = vmax.f32 %v2269, 0.0
        %v2286 = vmax.f32 %v2270, 0.0
        %v2287 = vmax.f32 %v2271, 0.0
        %v2288 = vmax.f32 %v2272, 0.0
        %v2289 = vmax.f32 %v2273, 0.0
        %v2290 = vmax.f32 %v2274, 0.0
        %v2291 = vmax.f32 %v2275, 0.0
        %v2292 = vmax.f32 %v2276, 0.0
        %v2293 = vmax.f32 %v2277, 0.0
        %v2294 = vmax.f32 %v2278, 0.0
        %v2295 = vmax.f32 %v2279, 0.0
        %v2296 = vmax.f32 %v2280, 0.0
        %v2297 = vmax.f32 %v2281, 0.0
        %v2298 = vpack.c.bf16 %v2283, %v2282
        %v2299 = vpack.c.bf16 %v2285, %v2284
        %v2300 = vpack.c.bf16 %v2287, %v2286
        %v2301 = vpack.c.bf16 %v2289, %v2288
        %v2302 = vpack.c.bf16 %v2291, %v2290
        %v2303 = vpack.c.bf16 %v2293, %v2292
        %v2304 = vpack.c.bf16 %v2295, %v2294
        %v2305 = vpack.c.bf16 %v2297, %v2296
        %v2306 = vld [vmem:[%s5] sm:$0xf]
        %v2307 = vld [vmem:[%s6] sm:$0x1]
        %v2309 = vperm.slane %v2307, 0
        %v2312 = vsel %vm1416, %v2298, 0
        %v2315 = vsel %vm1416, %v2299, 0
        %v2318 = vsel %vm1416, %v2300, 0
        %v2321 = vsel %vm1416, %v2301, 0
        %v2324 = vsel %vm1416, %v2302, 0
        %v2327 = vsel %vm1416, %v2303, 0
        %v2330 = vsel %vm1416, %v2304, 0
        %v2333 = vsel %vm1416, %v2305, 0
        %v2336 = vsel %vm1759, %v2306, 0
        %2338 = vmatpush.bf16.msra.mxu0 0
        %2339 = vmatpush.bf16.msra.mxu0 0
        %2340 = vmatpush.bf16.msra.mxu0 0
        %2341 = vmatpush.bf16.msra.mxu0 0
        %2342 = vmatpush.bf16.msra.mxu0 0
        %2343 = vmatpush.bf16.msra.mxu0 0
        %2344 = vmatpush.bf16.msra.mxu0 0
        %2345 = vmatpush.bf16.msra.mxu0 %v2336
        %2346 = vmatmul.bf16.gmra.mxu0 %v2312
        %v2347 = vpop.f32.mrf.mxu0
        %v2348 = vadd.f32 %v2309, %v2347
        %v2349 = vpop.f32.mrf.mxu0
        %v2350 = vadd.f32 %v2309, %v2349
        %2351 = vmatmul.bf16.gmra.mxu0 %v2315
        %v2352 = vpop.f32.mrf.mxu0
        %v2353 = vadd.f32 %v2309, %v2352
        %v2354 = vpop.f32.mrf.mxu0
        %v2355 = vadd.f32 %v2309, %v2354
        %2356 = vmatmul.bf16.gmra.mxu0 %v2318
        %v2357 = vpop.f32.mrf.mxu0
        %v2358 = vadd.f32 %v2309, %v2357
        %v2359 = vpop.f32.mrf.mxu0
        %v2360 = vadd.f32 %v2309, %v2359
        %2361 = vmatmul.bf16.gmra.mxu0 %v2321
        %v2362 = vpop.f32.mrf.mxu0
        %v2363 = vadd.f32 %v2309, %v2362
        %v2364 = vpop.f32.mrf.mxu0
        %v2365 = vadd.f32 %v2309, %v2364
        %2366 = vmatmul.bf16.gmra.mxu0 %v2324
        %v2367 = vpop.f32.mrf.mxu0
        %v2368 = vadd.f32 %v2309, %v2367
        %v2369 = vpop.f32.mrf.mxu0
        %v2370 = vadd.f32 %v2309, %v2369
        %2371 = vmatmul.bf16.gmra.mxu0 %v2327
        %v2372 = vpop.f32.mrf.mxu0
        %v2373 = vadd.f32 %v2309, %v2372
        %v2374 = vpop.f32.mrf.mxu0
        %v2375 = vadd.f32 %v2309, %v2374
        %2376 = vmatmul.bf16.gmra.mxu0 %v2330
        %v2377 = vpop.f32.mrf.mxu0
        %v2378 = vadd.f32 %v2309, %v2377
        %v2379 = vpop.f32.mrf.mxu0
        %v2380 = vadd.f32 %v2309, %v2379
        %2381 = vmatmul.bf16.gmra.mxu0 %v2333
        %v2382 = vpop.f32.mrf.mxu0
        %v2383 = vadd.f32 %v2309, %v2382
        %v2384 = vpop.f32.mrf.mxu0
        %v2385 = vadd.f32 %v2309, %v2384
        %2386 = vdwg.mxu0
        %s2387 = smul.u32 %s347, 2
        %s2388 = smul.addr %s2387, 4
        %s2389 = scalar_lea.vmem %s344, %s2388
        %v2390 = vld [vmem:[%s2389] sm:$0xf]
        %v2391 = vld [vmem:[%s2389 + $0x4] sm:$0xf]
        %v2392 = vld [vmem:[%s2389 + $0x8] sm:$0xf]
        %v2393 = vld [vmem:[%s2389 + $0xc] sm:$0xf]
        %v2394 = vld [vmem:[%s2389 + $0x10] sm:$0xf]
        %v2395 = vld [vmem:[%s2389 + $0x14] sm:$0xf]
        %v2396 = vld [vmem:[%s2389 + $0x18] sm:$0xf]
        %v2397 = vld [vmem:[%s2389 + $0x1c] sm:$0xf]
        %v2398 = vld [vmem:[%s2389 + $0x20] sm:$0xf]
        %v2399 = vld [vmem:[%s2389 + $0x24] sm:$0xf]
        %v2400 = vld [vmem:[%s2389 + $0x28] sm:$0xf]
        %v2401 = vld [vmem:[%s2389 + $0x2c] sm:$0xf]
        %v2402 = vld [vmem:[%s2389 + $0x30] sm:$0xf]
        %v2403 = vld [vmem:[%s2389 + $0x34] sm:$0xf]
        %v2404 = vld [vmem:[%s2389 + $0x38] sm:$0xf]
        %v2405 = vld [vmem:[%s2389 + $0x3c] sm:$0xf]
        %v2406 = vld [vmem:[%s7] sm:$0xf]
        %v2407 = vld [vmem:[%s7 + $0x4] sm:$0xf]
        %v2408 = vld [vmem:[%s8] sm:$0x1]
        %v2410 = vperm.slane %v2408, 0
        %v2428 = vunpack.c.l.b16 %v2390
        %v2429 = vunpack.c.l.b16 %v2391
        %v2430 = vunpack.c.l.b16 %v2392
        %v2431 = vunpack.c.l.b16 %v2393
        %v2432 = vunpack.c.l.b16 %v2394
        %v2433 = vunpack.c.l.b16 %v2395
        %v2434 = vunpack.c.l.b16 %v2396
        %v2435 = vunpack.c.l.b16 %v2397
        %v2436 = vunpack.c.l.b16 %v2398
        %v2437 = vunpack.c.l.b16 %v2399
        %v2438 = vunpack.c.l.b16 %v2400
        %v2439 = vunpack.c.l.b16 %v2401
        %v2440 = vunpack.c.l.b16 %v2402
        %v2441 = vunpack.c.l.b16 %v2403
        %v2442 = vunpack.c.l.b16 %v2404
        %v2443 = vunpack.c.l.b16 %v2405
        %v2444 = vpack.c.b16 %v2429, %v2428
        %v2445 = vpack.c.b16 %v2431, %v2430
        %v2446 = vpack.c.b16 %v2433, %v2432
        %v2447 = vpack.c.b16 %v2435, %v2434
        %v2448 = vpack.c.b16 %v2437, %v2436
        %v2449 = vpack.c.b16 %v2439, %v2438
        %v2450 = vpack.c.b16 %v2441, %v2440
        %v2451 = vpack.c.b16 %v2443, %v2442
        %v2454 = vunpack.c.l.b16 %v2406
        %v2455 = vunpack.c.l.b16 %v2407
        %v2456 = vpack.c.b16 %v2455, %v2454
        %v2459 = vsel %vm1433, %v2444, 0
        %v2462 = vsel %vm1433, %v2445, 0
        %v2465 = vsel %vm1433, %v2446, 0
        %v2468 = vsel %vm1433, %v2447, 0
        %v2471 = vsel %vm1433, %v2448, 0
        %v2474 = vsel %vm1433, %v2449, 0
        %v2477 = vsel %vm1433, %v2450, 0
        %v2480 = vsel %vm1433, %v2451, 0
        %2482 = vmatpush.bf16.msra.mxu0 0
        %2483 = vmatpush.bf16.msra.mxu0 0
        %2484 = vmatpush.bf16.msra.mxu0 0
        %2485 = vmatpush.bf16.msra.mxu0 0
        %2486 = vmatpush.bf16.msra.mxu0 0
        %2487 = vmatpush.bf16.msra.mxu0 0
        %2488 = vmatpush.bf16.msra.mxu0 0
        %2489 = vmatpush.bf16.msra.mxu0 %v2456
        %2490 = vmatmul.bf16.gmra.mxu0 %v2459
        %v2491 = vpop.f32.mrf.mxu0
        %v2492 = vadd.f32 %v2410, %v2491
        %v2493 = vpop.f32.mrf.mxu0
        %v2494 = vadd.f32 %v2410, %v2493
        %2495 = vmatmul.bf16.gmra.mxu0 %v2462
        %v2496 = vpop.f32.mrf.mxu0
        %v2497 = vadd.f32 %v2410, %v2496
        %v2498 = vpop.f32.mrf.mxu0
        %v2499 = vadd.f32 %v2410, %v2498
        %2500 = vmatmul.bf16.gmra.mxu0 %v2465
        %v2501 = vpop.f32.mrf.mxu0
        %v2502 = vadd.f32 %v2410, %v2501
        %v2503 = vpop.f32.mrf.mxu0
        %v2504 = vadd.f32 %v2410, %v2503
        %2505 = vmatmul.bf16.gmra.mxu0 %v2468
        %v2506 = vpop.f32.mrf.mxu0
        %v2507 = vadd.f32 %v2410, %v2506
        %v2508 = vpop.f32.mrf.mxu0
        %v2509 = vadd.f32 %v2410, %v2508
        %2510 = vmatmul.bf16.gmra.mxu0 %v2471
        %v2511 = vpop.f32.mrf.mxu0
        %v2512 = vadd.f32 %v2410, %v2511
        %v2513 = vpop.f32.mrf.mxu0
        %v2514 = vadd.f32 %v2410, %v2513
        %2515 = vmatmul.bf16.gmra.mxu0 %v2474
        %v2516 = vpop.f32.mrf.mxu0
        %v2517 = vadd.f32 %v2410, %v2516
        %v2518 = vpop.f32.mrf.mxu0
        %v2519 = vadd.f32 %v2410, %v2518
        %2520 = vmatmul.bf16.gmra.mxu0 %v2477
        %v2521 = vpop.f32.mrf.mxu0
        %v2522 = vadd.f32 %v2410, %v2521
        %v2523 = vpop.f32.mrf.mxu0
        %v2524 = vadd.f32 %v2410, %v2523
        %2525 = vmatmul.bf16.gmra.mxu0 %v2480
        %v2526 = vpop.f32.mrf.mxu0
        %v2527 = vadd.f32 %v2410, %v2526
        %v2528 = vpop.f32.mrf.mxu0
        %v2529 = vadd.f32 %v2410, %v2528
        %2530 = vdwg.mxu0
        %v2531 = vadd.f32 %v2348, %v2492
        %v2532 = vadd.f32 %v2350, %v2494
        %v2533 = vadd.f32 %v2353, %v2497
        %v2534 = vadd.f32 %v2355, %v2499
        %v2535 = vadd.f32 %v2358, %v2502
        %v2536 = vadd.f32 %v2360, %v2504
        %v2537 = vadd.f32 %v2363, %v2507
        %v2538 = vadd.f32 %v2365, %v2509
        %v2539 = vadd.f32 %v2368, %v2512
        %v2540 = vadd.f32 %v2370, %v2514
        %v2541 = vadd.f32 %v2373, %v2517
        %v2542 = vadd.f32 %v2375, %v2519
        %v2543 = vadd.f32 %v2378, %v2522
        %v2544 = vadd.f32 %v2380, %v2524
        %v2545 = vadd.f32 %v2383, %v2527
        %v2546 = vadd.f32 %v2385, %v2529
        %v2547 = vmax.f32 %v2531, 0.0
        %v2548 = vmax.f32 %v2532, 0.0
        %v2549 = vmax.f32 %v2533, 0.0
        %v2550 = vmax.f32 %v2534, 0.0
        %v2551 = vmax.f32 %v2535, 0.0
        %v2552 = vmax.f32 %v2536, 0.0
        %v2553 = vmax.f32 %v2537, 0.0
        %v2554 = vmax.f32 %v2538, 0.0
        %v2555 = vmax.f32 %v2539, 0.0
        %v2556 = vmax.f32 %v2540, 0.0
        %v2557 = vmax.f32 %v2541, 0.0
        %v2558 = vmax.f32 %v2542, 0.0
        %v2559 = vmax.f32 %v2543, 0.0
        %v2560 = vmax.f32 %v2544, 0.0
        %v2561 = vmax.f32 %v2545, 0.0
        %v2562 = vmax.f32 %v2546, 0.0
        %vm2563 = vcmask 261120
        %2564 = vst.msk [vmem:[%s339] sm:$0xff] %vm2563, %v2547
        %2565 = vst.msk [vmem:[%s339 + $0x8] sm:$0xff] %vm2563, %v2548
        %2566 = vst.msk [vmem:[%s339 + $0x10] sm:$0xff] %vm2563, %v2549
        %2567 = vst.msk [vmem:[%s339 + $0x18] sm:$0xff] %vm2563, %v2550
        %2568 = vst.msk [vmem:[%s339 + $0x20] sm:$0xff] %vm2563, %v2551
        %2569 = vst.msk [vmem:[%s339 + $0x28] sm:$0xff] %vm2563, %v2552
        %2570 = vst.msk [vmem:[%s339 + $0x30] sm:$0xff] %vm2563, %v2553
        %2571 = vst.msk [vmem:[%s339 + $0x38] sm:$0xff] %vm2563, %v2554
        %2572 = vst.msk [vmem:[%s339 + $0x40] sm:$0xff] %vm2563, %v2555
        %2573 = vst.msk [vmem:[%s339 + $0x48] sm:$0xff] %vm2563, %v2556
        %2574 = vst.msk [vmem:[%s339 + $0x50] sm:$0xff] %vm2563, %v2557
        %2575 = vst.msk [vmem:[%s339 + $0x58] sm:$0xff] %vm2563, %v2558
        %2576 = vst.msk [vmem:[%s339 + $0x60] sm:$0xff] %vm2563, %v2559
        %2577 = vst.msk [vmem:[%s339 + $0x68] sm:$0xff] %vm2563, %v2560
        %2578 = vst.msk [vmem:[%s339 + $0x70] sm:$0xff] %vm2563, %v2561
        %2579 = vst.msk [vmem:[%s339 + $0x78] sm:$0xff] %vm2563, %v2562
        %s2580 = sand.u32 %s239, 1
        %s2581 = scalar_lea.sflag [#allocation4], %s2580
        %s2582 = sand.u32 %s239, 1
        %s2583 = smul.addr %s2582, 128
        %s2584 = scalar_lea.vmem [#allocation3], %s2583
        // Predicated region
        $region61: #{bottleneck_forward.1} parent=55 // pred_check
          %p2585 = pneg %p249
        $region62: #{bottleneck_forward.1} parent=55 // pred_check_branch
          %2587 = sbr.rel (%p2585) target = $region64
        $region63: #{bottleneck_forward.1} parent=55 // pred_region
          %s2588 = smul.u32 8, %s28
          %2590 = vsyncadd %s2581, 0
          %s2591 = smul.addr %s2588, 2
          %s2592 = smul.addr %s27, 32
          %s2593 = sadd.s32 %s2591, %s2592
          %s2594 = smul.addr %s2593, 8
          %s2595 = scalar_lea.hbm %s9, %s2594
          %s2596 = sshll.u32 %s2584, 4
          %s2597 = int_to_ptr.vmem [resolvable:$true] %s2596
          %s2598 = sshll.u32 %s2595, 4
          %s2599 = int_to_ptr.hbm [resolvable:$true] %s2598
          %2604 = dma.vmem_to_hbm [thread:$0]  %s2597, 2048, %s2599, %s2581, 128, 128, 8
        $region64: #{bottleneck_forward.1} parent=55 // pred_fallthru
          _
      $region56: #{bottleneck_forward.1} parent=5 // pred_fallthru
        _
      %p2605 = scmp.le.s32.totalorder 2, %s18
      // Predicated region
      $region65: #{bottleneck_forward.1} parent=5 // pred_check
        %p2606 = pneg %p2605
      $region66: #{bottleneck_forward.1} parent=5 // pred_check_branch
        %2608 = sbr.rel (%p2606) target = $region68
      $region67: #{bottleneck_forward.1} parent=5 // pred_region
        %s2609 = ssub.s32 %s18, 2
        // Predicated region
        $region69: #{bottleneck_forward.1} parent=67 // pred_check
          %p2610 = pneg %p255
        $region70: #{bottleneck_forward.1} parent=67 // pred_check_branch
          %2612 = sbr.rel (%p2610) target = $region72
        $region71: #{bottleneck_forward.1} parent=67 // pred_region
          %s2613 = sand.u32 %s240, 1
          %s2614 = scalar_lea.sflag [#allocation4], %s2613
          %s2615 = sand.u32 %s240, 1
          %s2616 = smul.addr %s2615, 128
          %s2617 = scalar_lea.vmem [#allocation3], %s2616
          %2619 = dma.done %s2614, 2048
        $region72: #{bottleneck_forward.1} parent=67 // pred_fallthru
          _
      $region68: #{bottleneck_forward.1} parent=5 // pred_fallthru
        _
    $region6: #{bottleneck_forward.1} parent=1 // loop_footer
      %s22 = sadd.s32 1, %s18
    $region7: #{bottleneck_forward.1} parent=1 // loop_footer_branch
      %17 = sbr.rel target = $region3
    $region8: #{bottleneck_forward.1} parent=1 // loop_exit
      _
    %2620 = vsyncpa [#allocation4], 1
    %s2621 = scalar_lea.sflag [#allocation4], 1
    %2622 = vsyncpa %s2621, 1

</llo_original>
